<compile_context>
chip_gen: v5e
topology: v5e:2x2
jax: 0.10.0
libtpu: 0.0.40
codegen_flags: <defaults>
</compile_context>

<pallas_src>
import functools

import jax
import jax.numpy as jnp
from jax.experimental import pallas as pl
from jax.experimental.pallas import tpu as pltpu

LN_EPS = 1e-5        # PyTorch nn.LayerNorm default
TM_MAX = 512         # max batch tile (multiple of 8); working set stays < 16 MiB VMEM
IN_FEATURES = 768
HEAD_OUT = 32        # true head width
HEAD_PAD = 128       # lane-dense padded head width


def _round_up(x, m):
    return ((x + m - 1) // m) * m


def _pick_tm(B):
    """Batch tile: multiple of 8, capped at TM_MAX, and >=2 tiles for larger
    batches so v7x's two TensorCores both get work on the 'parallel' axis."""
    bp8 = _round_up(B, 8)
    if bp8 <= 128:                       # small batch: one tile, overhead negligible
        return bp8
    n_tiles = max(2, pl.cdiv(bp8, TM_MAX))
    return _round_up(pl.cdiv(bp8, n_tiles), 8)


def _use_bf16_affine():
    """bf16 LN-affine/ReLU only where the VPU has native bf16 (v6e / v7x)."""
    try:
        kind = jax.devices()[0].device_kind.lower()
    except Exception:
        return True
    return not any(tag in kind for tag in ("v2", "v3", "v4", "v5"))


def _linear_ln_relu(x_bf16, w_ref, p_ref, bf16_affine):
    """Linear (bf16 MXU, f32 acc) -> single-pass LayerNorm -> ReLU.

    p_ref rows: [0]=bias, [1]=gamma, [2]=beta (each (1, F), f32).
    Returns bf16 activations ready for the next MXU pass.
    """
    h = jnp.dot(x_bf16, w_ref[...], preferred_element_type=jnp.float32) + p_ref[0:1, :]

    # LayerNorm statistics always in f32 (single pass: var = E[h^2] - mu^2;
    # can dip slightly negative but is rescued by +eps inside the rsqrt).
    inv_n = 1.0 / h.shape[-1]
    s1 = jnp.sum(h, axis=-1, keepdims=True)
    s2 = jnp.sum(h * h, axis=-1, keepdims=True)
    mu = s1 * inv_n
    var = s2 * inv_n - mu * mu
    rstd = jax.lax.rsqrt(var + LN_EPS)          # EUP, f32

    gamma = p_ref[1:2, :]
    beta = p_ref[2:3, :]
    if bf16_affine:
        # v6e/v7x: affine + ReLU on bf16 vregs (2x elems/vreg -> ~half the VALU work);
        # result is already in the dtype the next matmul consumes.
        a = jnp.bfloat16
        scale = gamma.astype(a) * rstd.astype(a)
        return jnp.maximum((h.astype(a) - mu.astype(a)) * scale + beta.astype(a), 0.0)
    # v5e: no bf16 VPU (and MXU-bound anyway) -> keep affine in f32, cast once.
    out = jnp.maximum((h - mu) * (gamma * rstd) + beta, 0.0)
    return out.astype(jnp.bfloat16)


def protonet_kernel(x_ref,
                    w1_ref, p1_ref,
                    w2_ref, p2_ref,
                    w3_ref, p3_ref,
                    w4_ref, b4_ref,
                    o_ref, *, bf16_affine):
    x = x_ref[...]                                          # bf16 (TM, 768)
    h = _linear_ln_relu(x, w1_ref, p1_ref, bf16_affine)     # bf16 (TM, 512)
    h = _linear_ln_relu(h, w2_ref, p2_ref, bf16_affine)     # bf16 (TM, 512)
    h = _linear_ln_relu(h, w3_ref, p3_ref, bf16_affine)     # bf16 (TM, 128)
    # Head: Linear(128, 32) zero-padded to 128 output lanes -> unmasked lane-dense store.
    o_ref[...] = (jnp.dot(h, w4_ref[...], preferred_element_type=jnp.float32)
                  + b4_ref[...]).astype(o_ref.dtype)


def protonet_forward(x, params, *, tm=None):
    """x: any shape with leading batch dim; flattened to (B, 768) like nn.Flatten.

    params: [w1,b1,g1,be1, w2,b2,g2,be2, w3,b3,g3,be3, w4,b4]
            weights bf16 (in, out); bias/gamma/beta f32 (1, out).
    """
    B = x.shape[0]
    x2d = x.reshape(B, -1)
    assert x2d.shape[1] == IN_FEATURES, \
        f"expected {IN_FEATURES} features after flatten, got {x2d.shape[1]}"

    (w1, b1, g1, be1, w2, b2, g2, be2, w3, b3, g3, be3, w4, b4) = params

    # Pack (bias, gamma, beta) per LN layer into one (3, F) f32 block (fewer tiny DMAs).
    p1 = jnp.concatenate([b1, g1, be1], axis=0)
    p2 = jnp.concatenate([b2, g2, be2], axis=0)
    p3 = jnp.concatenate([b3, g3, be3], axis=0)

    # Lane-dense head: zero-pad the 32 output columns to 128 (extra columns are
    # exactly zero and are sliced off below).
    w4p = jnp.pad(w4, ((0, 0), (0, HEAD_PAD - HEAD_OUT)))
    b4p = jnp.pad(b4, ((0, 0), (0, HEAD_PAD - HEAD_OUT)))

    if tm is None:
        tm = _pick_tm(B)
    tm = _round_up(min(tm, _round_up(B, 8)), 8)
    Bp = _round_up(B, tm)

    x2d = x2d.astype(jnp.bfloat16)
    if Bp != B:
        # NOTE: padded rows hit LayerNorm with var=0 -> finite beta-valued garbage;
        # they are sliced off below and must never be reduced over.
        x2d = jnp.pad(x2d, ((0, Bp - B), (0, 0)))

    grid = (Bp // tm,)

    consts = [w1, p1, w2, p2, w3, p3, w4p, b4p]

    def const_spec(arr):
        # Full-array block, constant index, single-buffered -> stays resident in
        # VMEM across the grid with no redundant double buffer.
        return pl.BlockSpec(arr.shape, lambda i: (0, 0), pipeline_mode=pl.Buffered(1))

    in_specs = [pl.BlockSpec((tm, IN_FEATURES), lambda i: (i, 0))]
    in_specs += [const_spec(a) for a in consts]
    out_spec = pl.BlockSpec((tm, HEAD_PAD), lambda i: (i, 0))

    # Explicit VMEM budget: double-buffered x/out tiles + single-buffered constants
    # + live f32 intermediates, plus headroom.  Kept well under v7x's 64 MiB.
    const_bytes = sum(int(a.size) * a.dtype.itemsize for a in consts)
    vmem_bytes = (2 * tm * IN_FEATURES * 2          # x tiles (bf16, double-buffered)
                  + 2 * tm * HEAD_PAD * 4           # out tiles (f32, double-buffered)
                  + const_bytes                     # resident weights/params
                  + 4 * tm * 512 * 4                # live f32 intermediates (slack)
                  + (4 << 20))                      # headroom
    vmem_bytes = int(min(max(vmem_bytes, 16 << 20), 48 << 20))

    kernel = functools.partial(protonet_kernel, bf16_affine=_use_bf16_affine())

    out = pl.pallas_call(
        kernel,
        out_shape=jax.ShapeDtypeStruct((Bp, HEAD_PAD), jnp.float32),
        grid=grid,
        in_specs=in_specs,
        out_specs=out_spec,
        compiler_params=pltpu.CompilerParams(
            dimension_semantics=("parallel",),
            vmem_limit_bytes=vmem_bytes,
        ),
    )(x2d, *consts)

    return out[:B, :HEAD_OUT]


def init_params(key):
    """PyTorch-style init: Linear U(-1/sqrt(fan_in), 1/sqrt(fan_in)), LN gamma=1, beta=0.
    Weights stored (in, out) in bf16; bias/gamma/beta stored (1, out) in f32."""
    dims = [(768, 512), (512, 512), (512, 128), (128, 32)]
    params = []
    for i, (fin, fout) in enumerate(dims):
        kw, kb, key = jax.random.split(key, 3)
        bound = 1.0 / jnp.sqrt(jnp.float32(fin))
        w = jax.random.uniform(kw, (fin, fout), jnp.float32, -bound, bound)
        b = jax.random.uniform(kb, (1, fout), jnp.float32, -bound, bound)
        params += [w.astype(jnp.bfloat16), b]
        if i < 3:  # LayerNorm after the first three linears
            params += [jnp.ones((1, fout), jnp.float32),
                       jnp.zeros((1, fout), jnp.float32)]
    return params


def _reference_forward(x, params):
    """Plain-JAX reference mirroring the kernel arithmetic (bf16 dot inputs,
    f32 accumulate, f32 LayerNorm) for a sanity check."""
    B = x.shape[0]
    h = x.reshape(B, -1).astype(jnp.bfloat16)
    w1, b1, g1, be1, w2, b2, g2, be2, w3, b3, g3, be3, w4, b4 = params

    def ln(z, g, b):
        mu = jnp.mean(z, axis=-1, keepdims=True)
        var = jnp.mean((z - mu) ** 2, axis=-1, keepdims=True)
        return (z - mu) * jax.lax.rsqrt(var + LN_EPS) * g + b

    def block(h, w, b, g, be):
        z = jnp.dot(h, w, preferred_element_type=jnp.float32) + b
        return jnp.maximum(ln(z, g, be), 0.0).astype(jnp.bfloat16)

    h = block(h, w1, b1, g1, be1)
    h = block(h, w2, b2, g2, be2)
    h = block(h, w3, b3, g3, be3)
    return jnp.dot(h, w4, preferred_element_type=jnp.float32) + b4


if __name__ == "__main__":
    key = jax.random.PRNGKey(0)
    k_x, k_p = jax.random.split(key)

    # Deterministic small input: (B=8, C=3, H=16, W=16) flattens to (8, 768).
    x = jax.random.normal(k_x, (8, 3, 16, 16), jnp.float32)
    params = init_params(k_p)

    out = jax.block_until_ready(protonet_forward(x, params))

    assert out.shape == (8, 32) and out.dtype == jnp.float32
    assert bool(jnp.all(jnp.isfinite(out)))

    ref = jax.block_until_ready(_reference_forward(x, params))
    assert bool(jnp.allclose(out, ref, atol=5e-2, rtol=5e-2)), \
        f"max abs diff {float(jnp.max(jnp.abs(out - ref)))}"

    print("KERNEL_OK")
</pallas_src>

<mosaic_0001>
module attributes {stable_mosaic.version = 11 : i64} {
  func.func @protonet_kernel(%arg0: i32, %arg1: memref<8x768xbf16, #tpu.memory_space<vmem>>, %arg2: memref<768x512xbf16, #tpu.memory_space<vmem>>, %arg3: memref<3x512xf32, #tpu.memory_space<vmem>>, %arg4: memref<512x512xbf16, #tpu.memory_space<vmem>>, %arg5: memref<3x512xf32, #tpu.memory_space<vmem>>, %arg6: memref<512x128xbf16, #tpu.memory_space<vmem>>, %arg7: memref<3x128xf32, #tpu.memory_space<vmem>>, %arg8: memref<128x128xbf16, #tpu.memory_space<vmem>>, %arg9: memref<1x128xf32, #tpu.memory_space<vmem>>, %arg10: memref<8x128xf32, #tpu.memory_space<vmem>>) attributes {dimension_semantics = [#tpu.dimension_semantics<parallel>], iteration_bounds = array<i64: 1>, scalar_prefetch = 0 : i64, scratch_operands = 0 : i64, tpu.core_type = #tpu.core_type<tc>, window_params = [{transform_indices = @transform_0, window_bounds = array<i64: 8, 768>}, {pipeline_mode = #tpu.pipeline_mode<synchronous>, transform_indices = @transform_1, window_bounds = array<i64: 768, 512>}, {pipeline_mode = #tpu.pipeline_mode<synchronous>, transform_indices = @transform_2, window_bounds = array<i64: 3, 512>}, {pipeline_mode = #tpu.pipeline_mode<synchronous>, transform_indices = @transform_3, window_bounds = array<i64: 512, 512>}, {pipeline_mode = #tpu.pipeline_mode<synchronous>, transform_indices = @transform_4, window_bounds = array<i64: 3, 512>}, {pipeline_mode = #tpu.pipeline_mode<synchronous>, transform_indices = @transform_5, window_bounds = array<i64: 512, 128>}, {pipeline_mode = #tpu.pipeline_mode<synchronous>, transform_indices = @transform_6, window_bounds = array<i64: 3, 128>}, {pipeline_mode = #tpu.pipeline_mode<synchronous>, transform_indices = @transform_7, window_bounds = array<i64: 128, 128>}, {pipeline_mode = #tpu.pipeline_mode<synchronous>, transform_indices = @transform_8, window_bounds = array<i64: 1, 128>}, {transform_indices = @transform_9, window_bounds = array<i64: 8, 128>}]} {
    %c0 = arith.constant 0 : index
    %c0_0 = arith.constant 0 : index
    %0 = vector.load %arg1[%c0, %c0_0] : memref<8x768xbf16, #tpu.memory_space<vmem>>, vector<8x768xbf16>
    %c0_1 = arith.constant 0 : index
    %c0_2 = arith.constant 0 : index
    %1 = vector.load %arg2[%c0_1, %c0_2] : memref<768x512xbf16, #tpu.memory_space<vmem>>, vector<768x512xbf16>
    %cst = arith.constant dense<0.000000e+00> : vector<8x512xf32>
    %2 = tpu.matmul %0, %1, %cst {dimension_numbers = #tpu.dot_dimension_numbers<[1], [0], [0], [1], [0, 0, 1, 1], [], []>} : vector<8x768xbf16>, vector<768x512xbf16>, vector<8x512xf32> -> vector<8x512xf32>
    %c0_3 = arith.constant 0 : index
    %c0_4 = arith.constant 0 : index
    %3 = vector.load %arg3[%c0_3, %c0_4] : memref<3x512xf32, #tpu.memory_space<vmem>>, vector<1x512xf32>
    %4 = vector.broadcast %3 : vector<1x512xf32> to vector<8x512xf32>
    %5 = arith.addf %2, %4 : vector<8x512xf32>
    %cst_5 = arith.constant dense<0.000000e+00> : vector<8xf32>
    %6 = vector.multi_reduction <add>, %5, %cst_5 [1] : vector<8x512xf32> to vector<8xf32>
    %7 = vector.shape_cast %6 : vector<8xf32> to vector<8x1xf32>
    %8 = arith.mulf %5, %5 : vector<8x512xf32>
    %cst_6 = arith.constant dense<0.000000e+00> : vector<8xf32>
    %9 = vector.multi_reduction <add>, %8, %cst_6 [1] : vector<8x512xf32> to vector<8xf32>
    %10 = vector.shape_cast %9 : vector<8xf32> to vector<8x1xf32>
    %cst_7 = arith.constant 0.001953125 : f32
    %11 = vector.broadcast %cst_7 : f32 to vector<8x1xf32>
    %12 = arith.mulf %7, %11 : vector<8x1xf32>
    %cst_8 = arith.constant 0.001953125 : f32
    %13 = vector.broadcast %cst_8 : f32 to vector<8x1xf32>
    %14 = arith.mulf %10, %13 : vector<8x1xf32>
    %15 = arith.mulf %12, %12 : vector<8x1xf32>
    %16 = arith.subf %14, %15 : vector<8x1xf32>
    %cst_9 = arith.constant 9.99999974E-6 : f32
    %17 = vector.broadcast %cst_9 : f32 to vector<8x1xf32>
    %18 = arith.addf %16, %17 : vector<8x1xf32>
    %19 = math.rsqrt %18 : vector<8x1xf32>
    %c1 = arith.constant 1 : index
    %c0_10 = arith.constant 0 : index
    %20 = vector.load %arg3[%c1, %c0_10] : memref<3x512xf32, #tpu.memory_space<vmem>>, vector<1x512xf32>
    %c2 = arith.constant 2 : index
    %c0_11 = arith.constant 0 : index
    %21 = vector.load %arg3[%c2, %c0_11] : memref<3x512xf32, #tpu.memory_space<vmem>>, vector<1x512xf32>
    %22 = arith.truncf %20 : vector<1x512xf32> to vector<1x512xbf16>
    %23 = arith.truncf %19 : vector<8x1xf32> to vector<8x1xbf16>
    %24 = vector.broadcast %22 : vector<1x512xbf16> to vector<8x512xbf16>
    %25 = vector.broadcast %23 : vector<8x1xbf16> to vector<8x512xbf16>
    %26 = arith.mulf %24, %25 : vector<8x512xbf16>
    %27 = arith.truncf %5 : vector<8x512xf32> to vector<8x512xbf16>
    %28 = arith.truncf %12 : vector<8x1xf32> to vector<8x1xbf16>
    %29 = vector.broadcast %28 : vector<8x1xbf16> to vector<8x512xbf16>
    %30 = arith.subf %27, %29 : vector<8x512xbf16>
    %31 = arith.mulf %30, %26 : vector<8x512xbf16>
    %32 = arith.truncf %21 : vector<1x512xf32> to vector<1x512xbf16>
    %33 = vector.broadcast %32 : vector<1x512xbf16> to vector<8x512xbf16>
    %34 = arith.addf %31, %33 : vector<8x512xbf16>
    %cst_12 = arith.constant 0.000000e+00 : bf16
    %35 = vector.broadcast %cst_12 : bf16 to vector<8x512xbf16>
    %36 = arith.maximumf %34, %35 : vector<8x512xbf16>
    %c0_13 = arith.constant 0 : index
    %c0_14 = arith.constant 0 : index
    %37 = vector.load %arg4[%c0_13, %c0_14] : memref<512x512xbf16, #tpu.memory_space<vmem>>, vector<512x512xbf16>
    %cst_15 = arith.constant dense<0.000000e+00> : vector<8x512xf32>
    %38 = tpu.matmul %36, %37, %cst_15 {dimension_numbers = #tpu.dot_dimension_numbers<[1], [0], [0], [1], [0, 0, 1, 1], [], []>} : vector<8x512xbf16>, vector<512x512xbf16>, vector<8x512xf32> -> vector<8x512xf32>
    %c0_16 = arith.constant 0 : index
    %c0_17 = arith.constant 0 : index
    %39 = vector.load %arg5[%c0_16, %c0_17] : memref<3x512xf32, #tpu.memory_space<vmem>>, vector<1x512xf32>
    %40 = vector.broadcast %39 : vector<1x512xf32> to vector<8x512xf32>
    %41 = arith.addf %38, %40 : vector<8x512xf32>
    %cst_18 = arith.constant dense<0.000000e+00> : vector<8xf32>
    %42 = vector.multi_reduction <add>, %41, %cst_18 [1] : vector<8x512xf32> to vector<8xf32>
    %43 = vector.shape_cast %42 : vector<8xf32> to vector<8x1xf32>
    %44 = arith.mulf %41, %41 : vector<8x512xf32>
    %cst_19 = arith.constant dense<0.000000e+00> : vector<8xf32>
    %45 = vector.multi_reduction <add>, %44, %cst_19 [1] : vector<8x512xf32> to vector<8xf32>
    %46 = vector.shape_cast %45 : vector<8xf32> to vector<8x1xf32>
    %cst_20 = arith.constant 0.001953125 : f32
    %47 = vector.broadcast %cst_20 : f32 to vector<8x1xf32>
    %48 = arith.mulf %43, %47 : vector<8x1xf32>
    %cst_21 = arith.constant 0.001953125 : f32
    %49 = vector.broadcast %cst_21 : f32 to vector<8x1xf32>
    %50 = arith.mulf %46, %49 : vector<8x1xf32>
    %51 = arith.mulf %48, %48 : vector<8x1xf32>
    %52 = arith.subf %50, %51 : vector<8x1xf32>
    %cst_22 = arith.constant 9.99999974E-6 : f32
    %53 = vector.broadcast %cst_22 : f32 to vector<8x1xf32>
    %54 = arith.addf %52, %53 : vector<8x1xf32>
    %55 = math.rsqrt %54 : vector<8x1xf32>
    %c1_23 = arith.constant 1 : index
    %c0_24 = arith.constant 0 : index
    %56 = vector.load %arg5[%c1_23, %c0_24] : memref<3x512xf32, #tpu.memory_space<vmem>>, vector<1x512xf32>
    %c2_25 = arith.constant 2 : index
    %c0_26 = arith.constant 0 : index
    %57 = vector.load %arg5[%c2_25, %c0_26] : memref<3x512xf32, #tpu.memory_space<vmem>>, vector<1x512xf32>
    %58 = arith.truncf %56 : vector<1x512xf32> to vector<1x512xbf16>
    %59 = arith.truncf %55 : vector<8x1xf32> to vector<8x1xbf16>
    %60 = vector.broadcast %58 : vector<1x512xbf16> to vector<8x512xbf16>
    %61 = vector.broadcast %59 : vector<8x1xbf16> to vector<8x512xbf16>
    %62 = arith.mulf %60, %61 : vector<8x512xbf16>
    %63 = arith.truncf %41 : vector<8x512xf32> to vector<8x512xbf16>
    %64 = arith.truncf %48 : vector<8x1xf32> to vector<8x1xbf16>
    %65 = vector.broadcast %64 : vector<8x1xbf16> to vector<8x512xbf16>
    %66 = arith.subf %63, %65 : vector<8x512xbf16>
    %67 = arith.mulf %66, %62 : vector<8x512xbf16>
    %68 = arith.truncf %57 : vector<1x512xf32> to vector<1x512xbf16>
    %69 = vector.broadcast %68 : vector<1x512xbf16> to vector<8x512xbf16>
    %70 = arith.addf %67, %69 : vector<8x512xbf16>
    %cst_27 = arith.constant 0.000000e+00 : bf16
    %71 = vector.broadcast %cst_27 : bf16 to vector<8x512xbf16>
    %72 = arith.maximumf %70, %71 : vector<8x512xbf16>
    %c0_28 = arith.constant 0 : index
    %c0_29 = arith.constant 0 : index
    %73 = vector.load %arg6[%c0_28, %c0_29] : memref<512x128xbf16, #tpu.memory_space<vmem>>, vector<512x128xbf16>
    %cst_30 = arith.constant dense<0.000000e+00> : vector<8x128xf32>
    %74 = tpu.matmul %72, %73, %cst_30 {dimension_numbers = #tpu.dot_dimension_numbers<[1], [0], [0], [1], [0, 0, 1, 1], [], []>} : vector<8x512xbf16>, vector<512x128xbf16>, vector<8x128xf32> -> vector<8x128xf32>
    %c0_31 = arith.constant 0 : index
    %c0_32 = arith.constant 0 : index
    %75 = vector.load %arg7[%c0_31, %c0_32] : memref<3x128xf32, #tpu.memory_space<vmem>>, vector<1x128xf32>
    %76 = vector.broadcast %75 : vector<1x128xf32> to vector<8x128xf32>
    %77 = arith.addf %74, %76 : vector<8x128xf32>
    %cst_33 = arith.constant dense<0.000000e+00> : vector<8xf32>
    %78 = vector.multi_reduction <add>, %77, %cst_33 [1] : vector<8x128xf32> to vector<8xf32>
    %79 = vector.shape_cast %78 : vector<8xf32> to vector<8x1xf32>
    %80 = arith.mulf %77, %77 : vector<8x128xf32>
    %cst_34 = arith.constant dense<0.000000e+00> : vector<8xf32>
    %81 = vector.multi_reduction <add>, %80, %cst_34 [1] : vector<8x128xf32> to vector<8xf32>
    %82 = vector.shape_cast %81 : vector<8xf32> to vector<8x1xf32>
    %cst_35 = arith.constant 7.812500e-03 : f32
    %83 = vector.broadcast %cst_35 : f32 to vector<8x1xf32>
    %84 = arith.mulf %79, %83 : vector<8x1xf32>
    %cst_36 = arith.constant 7.812500e-03 : f32
    %85 = vector.broadcast %cst_36 : f32 to vector<8x1xf32>
    %86 = arith.mulf %82, %85 : vector<8x1xf32>
    %87 = arith.mulf %84, %84 : vector<8x1xf32>
    %88 = arith.subf %86, %87 : vector<8x1xf32>
    %cst_37 = arith.constant 9.99999974E-6 : f32
    %89 = vector.broadcast %cst_37 : f32 to vector<8x1xf32>
    %90 = arith.addf %88, %89 : vector<8x1xf32>
    %91 = math.rsqrt %90 : vector<8x1xf32>
    %c1_38 = arith.constant 1 : index
    %c0_39 = arith.constant 0 : index
    %92 = vector.load %arg7[%c1_38, %c0_39] : memref<3x128xf32, #tpu.memory_space<vmem>>, vector<1x128xf32>
    %c2_40 = arith.constant 2 : index
    %c0_41 = arith.constant 0 : index
    %93 = vector.load %arg7[%c2_40, %c0_41] : memref<3x128xf32, #tpu.memory_space<vmem>>, vector<1x128xf32>
    %94 = arith.truncf %92 : vector<1x128xf32> to vector<1x128xbf16>
    %95 = arith.truncf %91 : vector<8x1xf32> to vector<8x1xbf16>
    %96 = vector.broadcast %94 : vector<1x128xbf16> to vector<8x128xbf16>
    %97 = vector.broadcast %95 : vector<8x1xbf16> to vector<8x128xbf16>
    %98 = arith.mulf %96, %97 : vector<8x128xbf16>
    %99 = arith.truncf %77 : vector<8x128xf32> to vector<8x128xbf16>
    %100 = arith.truncf %84 : vector<8x1xf32> to vector<8x1xbf16>
    %101 = vector.broadcast %100 : vector<8x1xbf16> to vector<8x128xbf16>
    %102 = arith.subf %99, %101 : vector<8x128xbf16>
    %103 = arith.mulf %102, %98 : vector<8x128xbf16>
    %104 = arith.truncf %93 : vector<1x128xf32> to vector<1x128xbf16>
    %105 = vector.broadcast %104 : vector<1x128xbf16> to vector<8x128xbf16>
    %106 = arith.addf %103, %105 : vector<8x128xbf16>
    %cst_42 = arith.constant 0.000000e+00 : bf16
    %107 = vector.broadcast %cst_42 : bf16 to vector<8x128xbf16>
    %108 = arith.maximumf %106, %107 : vector<8x128xbf16>
    %c0_43 = arith.constant 0 : index
    %c0_44 = arith.constant 0 : index
    %109 = vector.load %arg8[%c0_43, %c0_44] : memref<128x128xbf16, #tpu.memory_space<vmem>>, vector<128x128xbf16>
    %cst_45 = arith.constant dense<0.000000e+00> : vector<8x128xf32>
    %110 = tpu.matmul %108, %109, %cst_45 {dimension_numbers = #tpu.dot_dimension_numbers<[1], [0], [0], [1], [0, 0, 1, 1], [], []>} : vector<8x128xbf16>, vector<128x128xbf16>, vector<8x128xf32> -> vector<8x128xf32>
    %c0_46 = arith.constant 0 : index
    %c0_47 = arith.constant 0 : index
    %111 = vector.load %arg9[%c0_46, %c0_47] : memref<1x128xf32, #tpu.memory_space<vmem>>, vector<1x128xf32>
    %112 = vector.broadcast %111 : vector<1x128xf32> to vector<8x128xf32>
    %113 = arith.addf %110, %112 : vector<8x128xf32>
    %c0_48 = arith.constant 0 : index
    %c0_49 = arith.constant 0 : index
    %114 = vector.load %arg10[%c0_48, %c0_49] : memref<8x128xf32, #tpu.memory_space<vmem>>, vector<8x128xf32>
    tpu.vector_store %arg10[%c0_48, %c0_49], %113 {strides = array<i32>} : memref<8x128xf32, #tpu.memory_space<vmem>>, vector<8x128xf32>,
    return
  }
  func.func @transform_0(%arg0: i32) -> (i32, i32) {
    %c0_i32 = arith.constant 0 : i32
    %c0_i32_0 = arith.constant 0 : i32
    return %arg0, %c0_i32 : i32, i32
  }
  func.func @transform_1(%arg0: i32) -> (i32, i32) {
    %c0_i32 = arith.constant 0 : i32
    %c0_i32_0 = arith.constant 0 : i32
    %c0_i32_1 = arith.constant 0 : i32
    return %c0_i32, %c0_i32_0 : i32, i32
  }
  func.func @transform_2(%arg0: i32) -> (i32, i32) {
    %c0_i32 = arith.constant 0 : i32
    %c0_i32_0 = arith.constant 0 : i32
    %c0_i32_1 = arith.constant 0 : i32
    return %c0_i32, %c0_i32_0 : i32, i32
  }
  func.func @transform_3(%arg0: i32) -> (i32, i32) {
    %c0_i32 = arith.constant 0 : i32
    %c0_i32_0 = arith.constant 0 : i32
    %c0_i32_1 = arith.constant 0 : i32
    return %c0_i32, %c0_i32_0 : i32, i32
  }
  func.func @transform_4(%arg0: i32) -> (i32, i32) {
    %c0_i32 = arith.constant 0 : i32
    %c0_i32_0 = arith.constant 0 : i32
    %c0_i32_1 = arith.constant 0 : i32
    return %c0_i32, %c0_i32_0 : i32, i32
  }
  func.func @transform_5(%arg0: i32) -> (i32, i32) {
    %c0_i32 = arith.constant 0 : i32
    %c0_i32_0 = arith.constant 0 : i32
    %c0_i32_1 = arith.constant 0 : i32
    return %c0_i32, %c0_i32_0 : i32, i32
  }
  func.func @transform_6(%arg0: i32) -> (i32, i32) {
    %c0_i32 = arith.constant 0 : i32
    %c0_i32_0 = arith.constant 0 : i32
    %c0_i32_1 = arith.constant 0 : i32
    return %c0_i32, %c0_i32_0 : i32, i32
  }
  func.func @transform_7(%arg0: i32) -> (i32, i32) {
    %c0_i32 = arith.constant 0 : i32
    %c0_i32_0 = arith.constant 0 : i32
    %c0_i32_1 = arith.constant 0 : i32
    return %c0_i32, %c0_i32_0 : i32, i32
  }
  func.func @transform_8(%arg0: i32) -> (i32, i32) {
    %c0_i32 = arith.constant 0 : i32
    %c0_i32_0 = arith.constant 0 : i32
    %c0_i32_1 = arith.constant 0 : i32
    return %c0_i32, %c0_i32_0 : i32, i32
  }
  func.func @transform_9(%arg0: i32) -> (i32, i32) {
    %c0_i32 = arith.constant 0 : i32
    %c0_i32_0 = arith.constant 0 : i32
    return %arg0, %c0_i32 : i32, i32
  }
}

</mosaic_0001>

<llo_original>
// kernel: tpu_custom_call.1
$region0: #{tpu_custom_call.1}
  #allocation0 [shape = 'u32[]', space=smem, size = 0x4, offset = 0x4, fixed_abs, tag = 'smem constant byte address 0x4 - core index']
  #allocation1 [shape = 'u32[72,128]{1,0:T(1,128)}', space=vmem, size = 0x9000, scoped, tag = 'internal scratch']
  %s0 = inlined_call_operand.hbm [shape: bf16[8,768], index: 0, kind: input, shape index: {}]
  %s1 = inlined_call_operand.hbm [shape: bf16[768,512], index: 1, kind: input, shape index: {}]
  %s2 = inlined_call_operand.hbm [shape: f32[3,512], index: 2, kind: input, shape index: {}]
  %s3 = inlined_call_operand.hbm [shape: bf16[512,512], index: 3, kind: input, shape index: {}]
  %s4 = inlined_call_operand.hbm [shape: f32[3,512], index: 4, kind: input, shape index: {}]
  %s5 = inlined_call_operand.hbm [shape: bf16[512,128], index: 5, kind: input, shape index: {}]
  %s6 = inlined_call_operand.vmem [shape: f32[3,128], index: 6, kind: input, shape index: {}]
  %s7 = inlined_call_operand.hbm [shape: bf16[128,128], index: 7, kind: input, shape index: {}]
  %s8 = inlined_call_operand.vmem [shape: f32[1,128], index: 8, kind: input, shape index: {}]
  %s9 = inlined_call_operand.hbm [shape: f32[8,128], index: 9, kind: output, shape index: {}]
  %s10 = sld [smem:[#allocation0]]
  $region74: #{tpu_custom_call.1} parent=0
    _
  %s12 = ssub.s32 1, %s10
  %s13 = scalar_select 0, %s12, %s10
  $region1: #{tpu_custom_call.1} parent=0
    #allocation2 [shape = 'u8[12288]{0}', space=vmem, size = 0x3000, scoped, tag = 'input window, operand 0, single buffered']
    #allocation3 [shape = 's32[1]{0}', space=sflag, size = 0x4, scoped, tag = 'scoped memory for tpu_custom_call.1']
    #allocation4 [shape = 's32[1]{0}', space=sflag, size = 0x4, scoped, tag = 'scoped memory for tpu_custom_call.1']
    #allocation5 [shape = 'u8[786432]{0}', space=vmem, size = 0xc0000, scoped, tag = 'input window, operand 1, single buffered']
    #allocation6 [shape = 's32[1]{0}', space=sflag, size = 0x4, scoped, tag = 'scoped memory for tpu_custom_call.1']
    #allocation7 [shape = 'u8[8192]{0}', space=vmem, size = 0x2000, scoped, tag = 'input window, operand 2, single buffered']
    #allocation8 [shape = 'u8[524288]{0}', space=vmem, size = 0x80000, scoped, tag = 'input window, operand 3, single buffered']
    #allocation9 [shape = 's32[1]{0}', space=sflag, size = 0x4, scoped, tag = 'scoped memory for tpu_custom_call.1']
    #allocation10 [shape = 'u8[8192]{0}', space=vmem, size = 0x2000, scoped, tag = 'input window, operand 4, single buffered']
    #allocation11 [shape = 'u8[131072]{0}', space=vmem, size = 0x20000, scoped, tag = 'input window, operand 5, single buffered']
    #allocation12 [shape = 's32[1]{0}', space=sflag, size = 0x4, scoped, tag = 'scoped memory for tpu_custom_call.1']
    #allocation13 [shape = 'u8[32768]{0}', space=vmem, size = 0x8000, scoped, tag = 'input window, operand 7, single buffered']
    #allocation14 [shape = 'u8[4096]{0}', space=vmem, size = 0x1000, scoped, tag = 'output window, operand 0, single buffered']
    %14 = vsyncpa [#allocation3], 0
    %15 = vsyncpa [#allocation6], 0
    %16 = vsyncpa [#allocation9], 0
    %17 = vsyncpa [#allocation12], 0
    %18 = vsyncpa [#allocation4], 0
    // Predicated region
    $region2: #{tpu_custom_call.1} parent=1 // pred_check
      _
    $region3: #{tpu_custom_call.1} parent=1 // pred_check_branch
      %20 = sbr.rel (0) target = $region5
    $region4: #{tpu_custom_call.1} parent=1 // pred_region
      %22 = vsyncadd [#allocation3], 0
      %s24 = sshll.u32 %s0, 4
      %s25 = int_to_ptr.hbm [resolvable:$true] %s24
      %s26 = sshll.u32 [#allocation2], 4
      %s27 = int_to_ptr.vmem [resolvable:$true] %s26
      %29 = dma.hbm_to_vmem [thread:$0]  %s25, 384, %s27, [#allocation3]
    $region5: #{tpu_custom_call.1} parent=1 // pred_fallthru
      _
    // Predicated region
    $region6: #{tpu_custom_call.1} parent=1 // pred_check
      _
    $region7: #{tpu_custom_call.1} parent=1 // pred_check_branch
      %31 = sbr.rel (0) target = $region9
    $region8: #{tpu_custom_call.1} parent=1 // pred_region
      %33 = vsyncadd [#allocation6], 0
      %s34 = sshll.u32 %s1, 4
      %s35 = int_to_ptr.hbm [resolvable:$true] %s34
      %s36 = sshll.u32 [#allocation5], 4
      %s37 = int_to_ptr.vmem [resolvable:$true] %s36
      %42 = dma.hbm_to_vmem [thread:$0]  %s35, 24576, %s37, [#allocation6], 256, 256, 16
    $region9: #{tpu_custom_call.1} parent=1 // pred_fallthru
      _
    // Predicated region
    $region10: #{tpu_custom_call.1} parent=1 // pred_check
      _
    $region11: #{tpu_custom_call.1} parent=1 // pred_check_branch
      %44 = sbr.rel (0) target = $region13
    $region12: #{tpu_custom_call.1} parent=1 // pred_region
      %46 = vsyncadd [#allocation6], 0
      %s48 = sshll.u32 %s2, 4
      %s49 = int_to_ptr.hbm [resolvable:$true] %s48
      %s50 = sshll.u32 [#allocation7], 4
      %s51 = int_to_ptr.vmem [resolvable:$true] %s50
      %53 = dma.hbm_to_vmem [thread:$0]  %s49, 256, %s51, [#allocation6]
    $region13: #{tpu_custom_call.1} parent=1 // pred_fallthru
      _
    // Predicated region
    $region14: #{tpu_custom_call.1} parent=1 // pred_check
      _
    $region15: #{tpu_custom_call.1} parent=1 // pred_check_branch
      %55 = sbr.rel (0) target = $region17
    $region16: #{tpu_custom_call.1} parent=1 // pred_region
      %57 = vsyncadd [#allocation9], 0
      %s58 = sshll.u32 %s3, 4
      %s59 = int_to_ptr.hbm [resolvable:$true] %s58
      %s60 = sshll.u32 [#allocation8], 4
      %s61 = int_to_ptr.vmem [resolvable:$true] %s60
      %66 = dma.hbm_to_vmem [thread:$0]  %s59, 16384, %s61, [#allocation9], 256, 256, 16
    $region17: #{tpu_custom_call.1} parent=1 // pred_fallthru
      _
    // Predicated region
    $region18: #{tpu_custom_call.1} parent=1 // pred_check
      _
    $region19: #{tpu_custom_call.1} parent=1 // pred_check_branch
      %68 = sbr.rel (0) target = $region21
    $region20: #{tpu_custom_call.1} parent=1 // pred_region
      %70 = vsyncadd [#allocation9], 0
      %s72 = sshll.u32 %s4, 4
      %s73 = int_to_ptr.hbm [resolvable:$true] %s72
      %s74 = sshll.u32 [#allocation10], 4
      %s75 = int_to_ptr.vmem [resolvable:$true] %s74
      %77 = dma.hbm_to_vmem [thread:$0]  %s73, 256, %s75, [#allocation9]
    $region21: #{tpu_custom_call.1} parent=1 // pred_fallthru
      _
    // Predicated region
    $region22: #{tpu_custom_call.1} parent=1 // pred_check
      _
    $region23: #{tpu_custom_call.1} parent=1 // pred_check_branch
      %79 = sbr.rel (0) target = $region25
    $region24: #{tpu_custom_call.1} parent=1 // pred_region
      %81 = vsyncadd [#allocation12], 0
      %s82 = sshll.u32 %s5, 4
      %s83 = int_to_ptr.hbm [resolvable:$true] %s82
      %s84 = sshll.u32 [#allocation11], 4
      %s85 = int_to_ptr.vmem [resolvable:$true] %s84
      %90 = dma.hbm_to_vmem [thread:$0]  %s83, 4096, %s85, [#allocation12], 64, 64, 4
    $region25: #{tpu_custom_call.1} parent=1 // pred_fallthru
      _
    // Predicated region
    $region26: #{tpu_custom_call.1} parent=1 // pred_check
      _
    $region27: #{tpu_custom_call.1} parent=1 // pred_check_branch
      %92 = sbr.rel (0) target = $region29
    $region28: #{tpu_custom_call.1} parent=1 // pred_region
      _
    $region29: #{tpu_custom_call.1} parent=1 // pred_fallthru
      _
    // Predicated region
    $region30: #{tpu_custom_call.1} parent=1 // pred_check
      _
    $region31: #{tpu_custom_call.1} parent=1 // pred_check_branch
      %94 = sbr.rel (0) target = $region33
    $region32: #{tpu_custom_call.1} parent=1 // pred_region
      %96 = vsyncadd [#allocation12], 0
      %s97 = sshll.u32 %s7, 4
      %s98 = int_to_ptr.hbm [resolvable:$true] %s97
      %s99 = sshll.u32 [#allocation13], 4
      %s100 = int_to_ptr.vmem [resolvable:$true] %s99
      %105 = dma.hbm_to_vmem [thread:$0]  %s98, 1024, %s100, [#allocation12], 64, 64, 4
    $region33: #{tpu_custom_call.1} parent=1 // pred_fallthru
      _
    // Predicated region
    $region34: #{tpu_custom_call.1} parent=1 // pred_check
      _
    $region35: #{tpu_custom_call.1} parent=1 // pred_check_branch
      %107 = sbr.rel (0) target = $region37
    $region36: #{tpu_custom_call.1} parent=1 // pred_region
      _
    $region37: #{tpu_custom_call.1} parent=1 // pred_fallthru
      _
    // Predicated region
    $region38: #{tpu_custom_call.1} parent=1 // pred_check
      _
    $region39: #{tpu_custom_call.1} parent=1 // pred_check_branch
      %109 = sbr.rel (0) target = $region41
    $region40: #{tpu_custom_call.1} parent=1 // pred_region
      %111 = dma.done [#allocation3], 384
    $region41: #{tpu_custom_call.1} parent=1 // pred_fallthru
      _
    // Predicated region
    $region42: #{tpu_custom_call.1} parent=1 // pred_check
      _
    $region43: #{tpu_custom_call.1} parent=1 // pred_check_branch
      %113 = sbr.rel (0) target = $region45
    $region44: #{tpu_custom_call.1} parent=1 // pred_region
      %115 = dma.done [#allocation6], 24576
    $region45: #{tpu_custom_call.1} parent=1 // pred_fallthru
      _
    // Predicated region
    $region46: #{tpu_custom_call.1} parent=1 // pred_check
      _
    $region47: #{tpu_custom_call.1} parent=1 // pred_check_branch
      %117 = sbr.rel (0) target = $region49
    $region48: #{tpu_custom_call.1} parent=1 // pred_region
      %119 = dma.done [#allocation6], 256
    $region49: #{tpu_custom_call.1} parent=1 // pred_fallthru
      _
    // Predicated region
    $region50: #{tpu_custom_call.1} parent=1 // pred_check
      _
    $region51: #{tpu_custom_call.1} parent=1 // pred_check_branch
      %121 = sbr.rel (0) target = $region53
    $region52: #{tpu_custom_call.1} parent=1 // pred_region
      %123 = dma.done [#allocation9], 16384
    $region53: #{tpu_custom_call.1} parent=1 // pred_fallthru
      _
    // Predicated region
    $region54: #{tpu_custom_call.1} parent=1 // pred_check
      _
    $region55: #{tpu_custom_call.1} parent=1 // pred_check_branch
      %125 = sbr.rel (0) target = $region57
    $region56: #{tpu_custom_call.1} parent=1 // pred_region
      %127 = dma.done [#allocation9], 256
    $region57: #{tpu_custom_call.1} parent=1 // pred_fallthru
      _
    // Predicated region
    $region58: #{tpu_custom_call.1} parent=1 // pred_check
      _
    $region59: #{tpu_custom_call.1} parent=1 // pred_check_branch
      %129 = sbr.rel (0) target = $region61
    $region60: #{tpu_custom_call.1} parent=1 // pred_region
      %131 = dma.done [#allocation12], 4096
    $region61: #{tpu_custom_call.1} parent=1 // pred_fallthru
      _
    // Predicated region
    $region62: #{tpu_custom_call.1} parent=1 // pred_check
      _
    $region63: #{tpu_custom_call.1} parent=1 // pred_check_branch
      %133 = sbr.rel (0) target = $region65
    $region64: #{tpu_custom_call.1} parent=1 // pred_region
      %135 = dma.done [#allocation12], 1024
    $region65: #{tpu_custom_call.1} parent=1 // pred_fallthru
      _
    %v136 = vld [vmem:[#allocation2] sm:$0xff]
    %v137 = vld [vmem:[#allocation2 + $0x8] sm:$0xff]
    %v138 = vld [vmem:[#allocation2 + $0x10] sm:$0xff]
    %v139 = vld [vmem:[#allocation5] sm:$0xff]
    %v140 = vld [vmem:[#allocation5 + $0x8] sm:$0xff]
    %v141 = vld [vmem:[#allocation5 + $0x10] sm:$0xff]
    %v142 = vld [vmem:[#allocation5 + $0x18] sm:$0xff]
    %v143 = vld [vmem:[#allocation5 + $0x20] sm:$0xff]
    %v144 = vld [vmem:[#allocation5 + $0x28] sm:$0xff]
    %v145 = vld [vmem:[#allocation5 + $0x30] sm:$0xff]
    %v146 = vld [vmem:[#allocation5 + $0x38] sm:$0xff]
    %v147 = vld [vmem:[#allocation5 + $0x40] sm:$0xff]
    %v148 = vld [vmem:[#allocation5 + $0x48] sm:$0xff]
    %v149 = vld [vmem:[#allocation5 + $0x50] sm:$0xff]
    %v150 = vld [vmem:[#allocation5 + $0x58] sm:$0xff]
    %v151 = vld [vmem:[#allocation5 + $0x60] sm:$0xff]
    %v152 = vld [vmem:[#allocation5 + $0x68] sm:$0xff]
    %v153 = vld [vmem:[#allocation5 + $0x70] sm:$0xff]
    %v154 = vld [vmem:[#allocation5 + $0x78] sm:$0xff]
    %v155 = vld [vmem:[#allocation5 + $0x80] sm:$0xff]
    %v156 = vld [vmem:[#allocation5 + $0x88] sm:$0xff]
    %v157 = vld [vmem:[#allocation5 + $0x90] sm:$0xff]
    %v158 = vld [vmem:[#allocation5 + $0x98] sm:$0xff]
    %v159 = vld [vmem:[#allocation5 + $0xa0] sm:$0xff]
    %v160 = vld [vmem:[#allocation5 + $0xa8] sm:$0xff]
    %v161 = vld [vmem:[#allocation5 + $0xb0] sm:$0xff]
    %v162 = vld [vmem:[#allocation5 + $0xb8] sm:$0xff]
    %v163 = vld [vmem:[#allocation5 + $0xc0] sm:$0xff]
    %v164 = vld [vmem:[#allocation5 + $0xc8] sm:$0xff]
    %v165 = vld [vmem:[#allocation5 + $0xd0] sm:$0xff]
    %v166 = vld [vmem:[#allocation5 + $0xd8] sm:$0xff]
    %v167 = vld [vmem:[#allocation5 + $0xe0] sm:$0xff]
    %v168 = vld [vmem:[#allocation5 + $0xe8] sm:$0xff]
    %v169 = vld [vmem:[#allocation5 + $0xf0] sm:$0xff]
    %v170 = vld [vmem:[#allocation5 + $0xf8] sm:$0xff]
    %v171 = vld [vmem:[#allocation5 + $0x100] sm:$0xff]
    %v172 = vld [vmem:[#allocation5 + $0x108] sm:$0xff]
    %v173 = vld [vmem:[#allocation5 + $0x110] sm:$0xff]
    %v174 = vld [vmem:[#allocation5 + $0x118] sm:$0xff]
    %v175 = vld [vmem:[#allocation5 + $0x120] sm:$0xff]
    %v176 = vld [vmem:[#allocation5 + $0x128] sm:$0xff]
    %v177 = vld [vmem:[#allocation5 + $0x130] sm:$0xff]
    %v178 = vld [vmem:[#allocation5 + $0x138] sm:$0xff]
    %v179 = vld [vmem:[#allocation5 + $0x140] sm:$0xff]
    %v180 = vld [vmem:[#allocation5 + $0x148] sm:$0xff]
    %v181 = vld [vmem:[#allocation5 + $0x150] sm:$0xff]
    %v182 = vld [vmem:[#allocation5 + $0x158] sm:$0xff]
    %v183 = vld [vmem:[#allocation5 + $0x160] sm:$0xff]
    %v184 = vld [vmem:[#allocation5 + $0x168] sm:$0xff]
    %v185 = vld [vmem:[#allocation5 + $0x170] sm:$0xff]
    %v186 = vld [vmem:[#allocation5 + $0x178] sm:$0xff]
    %v187 = vld [vmem:[#allocation5 + $0x180] sm:$0xff]
    %v188 = vld [vmem:[#allocation5 + $0x188] sm:$0xff]
    %v189 = vld [vmem:[#allocation5 + $0x190] sm:$0xff]
    %v190 = vld [vmem:[#allocation5 + $0x198] sm:$0xff]
    %v191 = vld [vmem:[#allocation5 + $0x1a0] sm:$0xff]
    %v192 = vld [vmem:[#allocation5 + $0x1a8] sm:$0xff]
    %v193 = vld [vmem:[#allocation5 + $0x1b0] sm:$0xff]
    %v194 = vld [vmem:[#allocation5 + $0x1b8] sm:$0xff]
    %v195 = vld [vmem:[#allocation5 + $0x1c0] sm:$0xff]
    %v196 = vld [vmem:[#allocation5 + $0x1c8] sm:$0xff]
    %v197 = vld [vmem:[#allocation5 + $0x1d0] sm:$0xff]
    %v198 = vld [vmem:[#allocation5 + $0x1d8] sm:$0xff]
    %v199 = vld [vmem:[#allocation5 + $0x1e0] sm:$0xff]
    %v200 = vld [vmem:[#allocation5 + $0x1e8] sm:$0xff]
    %v201 = vld [vmem:[#allocation5 + $0x1f0] sm:$0xff]
    %v202 = vld [vmem:[#allocation5 + $0x1f8] sm:$0xff]
    %v203 = vld [vmem:[#allocation5 + $0x200] sm:$0xff]
    %v204 = vld [vmem:[#allocation5 + $0x208] sm:$0xff]
    %v205 = vld [vmem:[#allocation5 + $0x210] sm:$0xff]
    %v206 = vld [vmem:[#allocation5 + $0x218] sm:$0xff]
    %v207 = vld [vmem:[#allocation5 + $0x220] sm:$0xff]
    %v208 = vld [vmem:[#allocation5 + $0x228] sm:$0xff]
    %v209 = vld [vmem:[#allocation5 + $0x230] sm:$0xff]
    %v210 = vld [vmem:[#allocation5 + $0x238] sm:$0xff]
    %v211 = vld [vmem:[#allocation5 + $0x240] sm:$0xff]
    %v212 = vld [vmem:[#allocation5 + $0x248] sm:$0xff]
    %v213 = vld [vmem:[#allocation5 + $0x250] sm:$0xff]
    %v214 = vld [vmem:[#allocation5 + $0x258] sm:$0xff]
    %v215 = vld [vmem:[#allocation5 + $0x260] sm:$0xff]
    %v216 = vld [vmem:[#allocation5 + $0x268] sm:$0xff]
    %v217 = vld [vmem:[#allocation5 + $0x270] sm:$0xff]
    %v218 = vld [vmem:[#allocation5 + $0x278] sm:$0xff]
    %v219 = vld [vmem:[#allocation5 + $0x280] sm:$0xff]
    %v220 = vld [vmem:[#allocation5 + $0x288] sm:$0xff]
    %v221 = vld [vmem:[#allocation5 + $0x290] sm:$0xff]
    %v222 = vld [vmem:[#allocation5 + $0x298] sm:$0xff]
    %v223 = vld [vmem:[#allocation5 + $0x2a0] sm:$0xff]
    %v224 = vld [vmem:[#allocation5 + $0x2a8] sm:$0xff]
    %v225 = vld [vmem:[#allocation5 + $0x2b0] sm:$0xff]
    %v226 = vld [vmem:[#allocation5 + $0x2b8] sm:$0xff]
    %v227 = vld [vmem:[#allocation5 + $0x2c0] sm:$0xff]
    %v228 = vld [vmem:[#allocation5 + $0x2c8] sm:$0xff]
    %v229 = vld [vmem:[#allocation5 + $0x2d0] sm:$0xff]
    %v230 = vld [vmem:[#allocation5 + $0x2d8] sm:$0xff]
    %v231 = vld [vmem:[#allocation5 + $0x2e0] sm:$0xff]
    %v232 = vld [vmem:[#allocation5 + $0x2e8] sm:$0xff]
    %v233 = vld [vmem:[#allocation5 + $0x2f0] sm:$0xff]
    %v234 = vld [vmem:[#allocation5 + $0x2f8] sm:$0xff]
    %v235 = vld [vmem:[#allocation5 + $0x300] sm:$0xff]
    %v236 = vld [vmem:[#allocation5 + $0x308] sm:$0xff]
    %v237 = vld [vmem:[#allocation5 + $0x310] sm:$0xff]
    %v238 = vld [vmem:[#allocation5 + $0x318] sm:$0xff]
    %v239 = vld [vmem:[#allocation5 + $0x320] sm:$0xff]
    %v240 = vld [vmem:[#allocation5 + $0x328] sm:$0xff]
    %v241 = vld [vmem:[#allocation5 + $0x330] sm:$0xff]
    %v242 = vld [vmem:[#allocation5 + $0x338] sm:$0xff]
    %v243 = vld [vmem:[#allocation5 + $0x340] sm:$0xff]
    %v244 = vld [vmem:[#allocation5 + $0x348] sm:$0xff]
    %v245 = vld [vmem:[#allocation5 + $0x350] sm:$0xff]
    %v246 = vld [vmem:[#allocation5 + $0x358] sm:$0xff]
    %v247 = vld [vmem:[#allocation5 + $0x360] sm:$0xff]
    %v248 = vld [vmem:[#allocation5 + $0x368] sm:$0xff]
    %v249 = vld [vmem:[#allocation5 + $0x370] sm:$0xff]
    %v250 = vld [vmem:[#allocation5 + $0x378] sm:$0xff]
    %v251 = vld [vmem:[#allocation5 + $0x380] sm:$0xff]
    %v252 = vld [vmem:[#allocation5 + $0x388] sm:$0xff]
    %v253 = vld [vmem:[#allocation5 + $0x390] sm:$0xff]
    %v254 = vld [vmem:[#allocation5 + $0x398] sm:$0xff]
    %v255 = vld [vmem:[#allocation5 + $0x3a0] sm:$0xff]
    %v256 = vld [vmem:[#allocation5 + $0x3a8] sm:$0xff]
    %v257 = vld [vmem:[#allocation5 + $0x3b0] sm:$0xff]
    %v258 = vld [vmem:[#allocation5 + $0x3b8] sm:$0xff]
    %v259 = vld [vmem:[#allocation5 + $0x3c0] sm:$0xff]
    %v260 = vld [vmem:[#allocation5 + $0x3c8] sm:$0xff]
    %v261 = vld [vmem:[#allocation5 + $0x3d0] sm:$0xff]
    %v262 = vld [vmem:[#allocation5 + $0x3d8] sm:$0xff]
    %v263 = vld [vmem:[#allocation5 + $0x3e0] sm:$0xff]
    %v264 = vld [vmem:[#allocation5 + $0x3e8] sm:$0xff]
    %v265 = vld [vmem:[#allocation5 + $0x3f0] sm:$0xff]
    %v266 = vld [vmem:[#allocation5 + $0x3f8] sm:$0xff]
    %v267 = vld [vmem:[#allocation5 + $0x400] sm:$0xff]
    %v268 = vld [vmem:[#allocation5 + $0x408] sm:$0xff]
    %v269 = vld [vmem:[#allocation5 + $0x410] sm:$0xff]
    %v270 = vld [vmem:[#allocation5 + $0x418] sm:$0xff]
    %v271 = vld [vmem:[#allocation5 + $0x420] sm:$0xff]
    %v272 = vld [vmem:[#allocation5 + $0x428] sm:$0xff]
    %v273 = vld [vmem:[#allocation5 + $0x430] sm:$0xff]
    %v274 = vld [vmem:[#allocation5 + $0x438] sm:$0xff]
    %v275 = vld [vmem:[#allocation5 + $0x440] sm:$0xff]
    %v276 = vld [vmem:[#allocation5 + $0x448] sm:$0xff]
    %v277 = vld [vmem:[#allocation5 + $0x450] sm:$0xff]
    %v278 = vld [vmem:[#allocation5 + $0x458] sm:$0xff]
    %v279 = vld [vmem:[#allocation5 + $0x460] sm:$0xff]
    %v280 = vld [vmem:[#allocation5 + $0x468] sm:$0xff]
    %v281 = vld [vmem:[#allocation5 + $0x470] sm:$0xff]
    %v282 = vld [vmem:[#allocation5 + $0x478] sm:$0xff]
    %v283 = vld [vmem:[#allocation5 + $0x480] sm:$0xff]
    %v284 = vld [vmem:[#allocation5 + $0x488] sm:$0xff]
    %v285 = vld [vmem:[#allocation5 + $0x490] sm:$0xff]
    %v286 = vld [vmem:[#allocation5 + $0x498] sm:$0xff]
    %v287 = vld [vmem:[#allocation5 + $0x4a0] sm:$0xff]
    %v288 = vld [vmem:[#allocation5 + $0x4a8] sm:$0xff]
    %v289 = vld [vmem:[#allocation5 + $0x4b0] sm:$0xff]
    %v290 = vld [vmem:[#allocation5 + $0x4b8] sm:$0xff]
    %v291 = vld [vmem:[#allocation5 + $0x4c0] sm:$0xff]
    %v292 = vld [vmem:[#allocation5 + $0x4c8] sm:$0xff]
    %v293 = vld [vmem:[#allocation5 + $0x4d0] sm:$0xff]
    %v294 = vld [vmem:[#allocation5 + $0x4d8] sm:$0xff]
    %v295 = vld [vmem:[#allocation5 + $0x4e0] sm:$0xff]
    %v296 = vld [vmem:[#allocation5 + $0x4e8] sm:$0xff]
    %v297 = vld [vmem:[#allocation5 + $0x4f0] sm:$0xff]
    %v298 = vld [vmem:[#allocation5 + $0x4f8] sm:$0xff]
    %v299 = vld [vmem:[#allocation5 + $0x500] sm:$0xff]
    %v300 = vld [vmem:[#allocation5 + $0x508] sm:$0xff]
    %v301 = vld [vmem:[#allocation5 + $0x510] sm:$0xff]
    %v302 = vld [vmem:[#allocation5 + $0x518] sm:$0xff]
    %v303 = vld [vmem:[#allocation5 + $0x520] sm:$0xff]
    %v304 = vld [vmem:[#allocation5 + $0x528] sm:$0xff]
    %v305 = vld [vmem:[#allocation5 + $0x530] sm:$0xff]
    %v306 = vld [vmem:[#allocation5 + $0x538] sm:$0xff]
    %v307 = vld [vmem:[#allocation5 + $0x540] sm:$0xff]
    %v308 = vld [vmem:[#allocation5 + $0x548] sm:$0xff]
    %v309 = vld [vmem:[#allocation5 + $0x550] sm:$0xff]
    %v310 = vld [vmem:[#allocation5 + $0x558] sm:$0xff]
    %v311 = vld [vmem:[#allocation5 + $0x560] sm:$0xff]
    %v312 = vld [vmem:[#allocation5 + $0x568] sm:$0xff]
    %v313 = vld [vmem:[#allocation5 + $0x570] sm:$0xff]
    %v314 = vld [vmem:[#allocation5 + $0x578] sm:$0xff]
    %v315 = vld [vmem:[#allocation5 + $0x580] sm:$0xff]
    %v316 = vld [vmem:[#allocation5 + $0x588] sm:$0xff]
    %v317 = vld [vmem:[#allocation5 + $0x590] sm:$0xff]
    %v318 = vld [vmem:[#allocation5 + $0x598] sm:$0xff]
    %v319 = vld [vmem:[#allocation5 + $0x5a0] sm:$0xff]
    %v320 = vld [vmem:[#allocation5 + $0x5a8] sm:$0xff]
    %v321 = vld [vmem:[#allocation5 + $0x5b0] sm:$0xff]
    %v322 = vld [vmem:[#allocation5 + $0x5b8] sm:$0xff]
    %v323 = vld [vmem:[#allocation5 + $0x5c0] sm:$0xff]
    %v324 = vld [vmem:[#allocation5 + $0x5c8] sm:$0xff]
    %v325 = vld [vmem:[#allocation5 + $0x5d0] sm:$0xff]
    %v326 = vld [vmem:[#allocation5 + $0x5d8] sm:$0xff]
    %v327 = vld [vmem:[#allocation5 + $0x5e0] sm:$0xff]
    %v328 = vld [vmem:[#allocation5 + $0x5e8] sm:$0xff]
    %v329 = vld [vmem:[#allocation5 + $0x5f0] sm:$0xff]
    %v330 = vld [vmem:[#allocation5 + $0x5f8] sm:$0xff]
    %v331 = vld [vmem:[#allocation7] ss:$4 sm:$0xf]
    %v333 = vperm.slane %v331, 0
    %v334 = vperm.slane %v331, 1
    %v335 = vperm.slane %v331, 2
    %v336 = vperm.slane %v331, 3
    %v344 = vunpack.c.l.b16 %v136
    %v345 = vunpack.c.h.b16 %v136
    %v346 = vunpack.c.l.b16 %v137
    %v347 = vunpack.c.h.b16 %v137
    %v348 = vunpack.c.l.b16 %v138
    %v349 = vunpack.c.h.b16 %v138
    %v350 = vpack.c.b16 %v344, %v344
    %v351 = vpack.c.b16 %v345, %v345
    %v352 = vpack.c.b16 %v346, %v346
    %v353 = vpack.c.b16 %v347, %v347
    %v354 = vpack.c.b16 %v348, %v348
    %v355 = vpack.c.b16 %v349, %v349
    %v554 = vunpack.c.l.b16 %v139
    %v555 = vunpack.c.h.b16 %v139
    %v556 = vunpack.c.l.b16 %v140
    %v557 = vunpack.c.h.b16 %v140
    %v558 = vunpack.c.l.b16 %v141
    %v559 = vunpack.c.h.b16 %v141
    %v560 = vunpack.c.l.b16 %v142
    %v561 = vunpack.c.h.b16 %v142
    %v562 = vunpack.c.l.b16 %v143
    %v563 = vunpack.c.h.b16 %v143
    %v564 = vunpack.c.l.b16 %v144
    %v565 = vunpack.c.h.b16 %v144
    %v566 = vunpack.c.l.b16 %v145
    %v567 = vunpack.c.h.b16 %v145
    %v568 = vunpack.c.l.b16 %v146
    %v569 = vunpack.c.h.b16 %v146
    %v570 = vunpack.c.l.b16 %v147
    %v571 = vunpack.c.h.b16 %v147
    %v572 = vunpack.c.l.b16 %v148
    %v573 = vunpack.c.h.b16 %v148
    %v574 = vunpack.c.l.b16 %v149
    %v575 = vunpack.c.h.b16 %v149
    %v576 = vunpack.c.l.b16 %v150
    %v577 = vunpack.c.h.b16 %v150
    %v578 = vunpack.c.l.b16 %v151
    %v579 = vunpack.c.h.b16 %v151
    %v580 = vunpack.c.l.b16 %v152
    %v581 = vunpack.c.h.b16 %v152
    %v582 = vunpack.c.l.b16 %v153
    %v583 = vunpack.c.h.b16 %v153
    %v584 = vunpack.c.l.b16 %v154
    %v585 = vunpack.c.h.b16 %v154
    %v586 = vunpack.c.l.b16 %v155
    %v587 = vunpack.c.h.b16 %v155
    %v588 = vunpack.c.l.b16 %v156
    %v589 = vunpack.c.h.b16 %v156
    %v590 = vunpack.c.l.b16 %v157
    %v591 = vunpack.c.h.b16 %v157
    %v592 = vunpack.c.l.b16 %v158
    %v593 = vunpack.c.h.b16 %v158
    %v594 = vunpack.c.l.b16 %v159
    %v595 = vunpack.c.h.b16 %v159
    %v596 = vunpack.c.l.b16 %v160
    %v597 = vunpack.c.h.b16 %v160
    %v598 = vunpack.c.l.b16 %v161
    %v599 = vunpack.c.h.b16 %v161
    %v600 = vunpack.c.l.b16 %v162
    %v601 = vunpack.c.h.b16 %v162
    %v602 = vunpack.c.l.b16 %v163
    %v603 = vunpack.c.h.b16 %v163
    %v604 = vunpack.c.l.b16 %v164
    %v605 = vunpack.c.h.b16 %v164
    %v606 = vunpack.c.l.b16 %v165
    %v607 = vunpack.c.h.b16 %v165
    %v608 = vunpack.c.l.b16 %v166
    %v609 = vunpack.c.h.b16 %v166
    %v610 = vunpack.c.l.b16 %v167
    %v611 = vunpack.c.h.b16 %v167
    %v612 = vunpack.c.l.b16 %v168
    %v613 = vunpack.c.h.b16 %v168
    %v614 = vunpack.c.l.b16 %v169
    %v615 = vunpack.c.h.b16 %v169
    %v616 = vunpack.c.l.b16 %v170
    %v617 = vunpack.c.h.b16 %v170
    %v618 = vunpack.c.l.b16 %v171
    %v619 = vunpack.c.h.b16 %v171
    %v620 = vunpack.c.l.b16 %v172
    %v621 = vunpack.c.h.b16 %v172
    %v622 = vunpack.c.l.b16 %v173
    %v623 = vunpack.c.h.b16 %v173
    %v624 = vunpack.c.l.b16 %v174
    %v625 = vunpack.c.h.b16 %v174
    %v626 = vunpack.c.l.b16 %v175
    %v627 = vunpack.c.h.b16 %v175
    %v628 = vunpack.c.l.b16 %v176
    %v629 = vunpack.c.h.b16 %v176
    %v630 = vunpack.c.l.b16 %v177
    %v631 = vunpack.c.h.b16 %v177
    %v632 = vunpack.c.l.b16 %v178
    %v633 = vunpack.c.h.b16 %v178
    %v634 = vunpack.c.l.b16 %v179
    %v635 = vunpack.c.h.b16 %v179
    %v636 = vunpack.c.l.b16 %v180
    %v637 = vunpack.c.h.b16 %v180
    %v638 = vunpack.c.l.b16 %v181
    %v639 = vunpack.c.h.b16 %v181
    %v640 = vunpack.c.l.b16 %v182
    %v641 = vunpack.c.h.b16 %v182
    %v642 = vunpack.c.l.b16 %v183
    %v643 = vunpack.c.h.b16 %v183
    %v644 = vunpack.c.l.b16 %v184
    %v645 = vunpack.c.h.b16 %v184
    %v646 = vunpack.c.l.b16 %v185
    %v647 = vunpack.c.h.b16 %v185
    %v648 = vunpack.c.l.b16 %v186
    %v649 = vunpack.c.h.b16 %v186
    %v650 = vunpack.c.l.b16 %v187
    %v651 = vunpack.c.h.b16 %v187
    %v652 = vunpack.c.l.b16 %v188
    %v653 = vunpack.c.h.b16 %v188
    %v654 = vunpack.c.l.b16 %v189
    %v655 = vunpack.c.h.b16 %v189
    %v656 = vunpack.c.l.b16 %v190
    %v657 = vunpack.c.h.b16 %v190
    %v658 = vunpack.c.l.b16 %v191
    %v659 = vunpack.c.h.b16 %v191
    %v660 = vunpack.c.l.b16 %v192
    %v661 = vunpack.c.h.b16 %v192
    %v662 = vunpack.c.l.b16 %v193
    %v663 = vunpack.c.h.b16 %v193
    %v664 = vunpack.c.l.b16 %v194
    %v665 = vunpack.c.h.b16 %v194
    %v666 = vunpack.c.l.b16 %v195
    %v667 = vunpack.c.h.b16 %v195
    %v668 = vunpack.c.l.b16 %v196
    %v669 = vunpack.c.h.b16 %v196
    %v670 = vunpack.c.l.b16 %v197
    %v671 = vunpack.c.h.b16 %v197
    %v672 = vunpack.c.l.b16 %v198
    %v673 = vunpack.c.h.b16 %v198
    %v674 = vunpack.c.l.b16 %v199
    %v675 = vunpack.c.h.b16 %v199
    %v676 = vunpack.c.l.b16 %v200
    %v677 = vunpack.c.h.b16 %v200
    %v678 = vunpack.c.l.b16 %v201
    %v679 = vunpack.c.h.b16 %v201
    %v680 = vunpack.c.l.b16 %v202
    %v681 = vunpack.c.h.b16 %v202
    %v682 = vunpack.c.l.b16 %v203
    %v683 = vunpack.c.h.b16 %v203
    %v684 = vunpack.c.l.b16 %v204
    %v685 = vunpack.c.h.b16 %v204
    %v686 = vunpack.c.l.b16 %v205
    %v687 = vunpack.c.h.b16 %v205
    %v688 = vunpack.c.l.b16 %v206
    %v689 = vunpack.c.h.b16 %v206
    %v690 = vunpack.c.l.b16 %v207
    %v691 = vunpack.c.h.b16 %v207
    %v692 = vunpack.c.l.b16 %v208
    %v693 = vunpack.c.h.b16 %v208
    %v694 = vunpack.c.l.b16 %v209
    %v695 = vunpack.c.h.b16 %v209
    %v696 = vunpack.c.l.b16 %v210
    %v697 = vunpack.c.h.b16 %v210
    %v698 = vunpack.c.l.b16 %v211
    %v699 = vunpack.c.h.b16 %v211
    %v700 = vunpack.c.l.b16 %v212
    %v701 = vunpack.c.h.b16 %v212
    %v702 = vunpack.c.l.b16 %v213
    %v703 = vunpack.c.h.b16 %v213
    %v704 = vunpack.c.l.b16 %v214
    %v705 = vunpack.c.h.b16 %v214
    %v706 = vunpack.c.l.b16 %v215
    %v707 = vunpack.c.h.b16 %v215
    %v708 = vunpack.c.l.b16 %v216
    %v709 = vunpack.c.h.b16 %v216
    %v710 = vunpack.c.l.b16 %v217
    %v711 = vunpack.c.h.b16 %v217
    %v712 = vunpack.c.l.b16 %v218
    %v713 = vunpack.c.h.b16 %v218
    %v714 = vunpack.c.l.b16 %v219
    %v715 = vunpack.c.h.b16 %v219
    %v716 = vunpack.c.l.b16 %v220
    %v717 = vunpack.c.h.b16 %v220
    %v718 = vunpack.c.l.b16 %v221
    %v719 = vunpack.c.h.b16 %v221
    %v720 = vunpack.c.l.b16 %v222
    %v721 = vunpack.c.h.b16 %v222
    %v722 = vunpack.c.l.b16 %v223
    %v723 = vunpack.c.h.b16 %v223
    %v724 = vunpack.c.l.b16 %v224
    %v725 = vunpack.c.h.b16 %v224
    %v726 = vunpack.c.l.b16 %v225
    %v727 = vunpack.c.h.b16 %v225
    %v728 = vunpack.c.l.b16 %v226
    %v729 = vunpack.c.h.b16 %v226
    %v730 = vunpack.c.l.b16 %v227
    %v731 = vunpack.c.h.b16 %v227
    %v732 = vunpack.c.l.b16 %v228
    %v733 = vunpack.c.h.b16 %v228
    %v734 = vunpack.c.l.b16 %v229
    %v735 = vunpack.c.h.b16 %v229
    %v736 = vunpack.c.l.b16 %v230
    %v737 = vunpack.c.h.b16 %v230
    %v738 = vunpack.c.l.b16 %v231
    %v739 = vunpack.c.h.b16 %v231
    %v740 = vunpack.c.l.b16 %v232
    %v741 = vunpack.c.h.b16 %v232
    %v742 = vunpack.c.l.b16 %v233
    %v743 = vunpack.c.h.b16 %v233
    %v744 = vunpack.c.l.b16 %v234
    %v745 = vunpack.c.h.b16 %v234
    %v746 = vunpack.c.l.b16 %v235
    %v747 = vunpack.c.h.b16 %v235
    %v748 = vunpack.c.l.b16 %v236
    %v749 = vunpack.c.h.b16 %v236
    %v750 = vunpack.c.l.b16 %v237
    %v751 = vunpack.c.h.b16 %v237
    %v752 = vunpack.c.l.b16 %v238
    %v753 = vunpack.c.h.b16 %v238
    %v754 = vunpack.c.l.b16 %v239
    %v755 = vunpack.c.h.b16 %v239
    %v756 = vunpack.c.l.b16 %v240
    %v757 = vunpack.c.h.b16 %v240
    %v758 = vunpack.c.l.b16 %v241
    %v759 = vunpack.c.h.b16 %v241
    %v760 = vunpack.c.l.b16 %v242
    %v761 = vunpack.c.h.b16 %v242
    %v762 = vunpack.c.l.b16 %v243
    %v763 = vunpack.c.h.b16 %v243
    %v764 = vunpack.c.l.b16 %v244
    %v765 = vunpack.c.h.b16 %v244
    %v766 = vunpack.c.l.b16 %v245
    %v767 = vunpack.c.h.b16 %v245
    %v768 = vunpack.c.l.b16 %v246
    %v769 = vunpack.c.h.b16 %v246
    %v770 = vunpack.c.l.b16 %v247
    %v771 = vunpack.c.h.b16 %v247
    %v772 = vunpack.c.l.b16 %v248
    %v773 = vunpack.c.h.b16 %v248
    %v774 = vunpack.c.l.b16 %v249
    %v775 = vunpack.c.h.b16 %v249
    %v776 = vunpack.c.l.b16 %v250
    %v777 = vunpack.c.h.b16 %v250
    %v778 = vunpack.c.l.b16 %v251
    %v779 = vunpack.c.h.b16 %v251
    %v780 = vunpack.c.l.b16 %v252
    %v781 = vunpack.c.h.b16 %v252
    %v782 = vunpack.c.l.b16 %v253
    %v783 = vunpack.c.h.b16 %v253
    %v784 = vunpack.c.l.b16 %v254
    %v785 = vunpack.c.h.b16 %v254
    %v786 = vunpack.c.l.b16 %v255
    %v787 = vunpack.c.h.b16 %v255
    %v788 = vunpack.c.l.b16 %v256
    %v789 = vunpack.c.h.b16 %v256
    %v790 = vunpack.c.l.b16 %v257
    %v791 = vunpack.c.h.b16 %v257
    %v792 = vunpack.c.l.b16 %v258
    %v793 = vunpack.c.h.b16 %v258
    %v794 = vunpack.c.l.b16 %v259
    %v795 = vunpack.c.h.b16 %v259
    %v796 = vunpack.c.l.b16 %v260
    %v797 = vunpack.c.h.b16 %v260
    %v798 = vunpack.c.l.b16 %v261
    %v799 = vunpack.c.h.b16 %v261
    %v800 = vunpack.c.l.b16 %v262
    %v801 = vunpack.c.h.b16 %v262
    %v802 = vunpack.c.l.b16 %v263
    %v803 = vunpack.c.h.b16 %v263
    %v804 = vunpack.c.l.b16 %v264
    %v805 = vunpack.c.h.b16 %v264
    %v806 = vunpack.c.l.b16 %v265
    %v807 = vunpack.c.h.b16 %v265
    %v808 = vunpack.c.l.b16 %v266
    %v809 = vunpack.c.h.b16 %v266
    %v810 = vunpack.c.l.b16 %v267
    %v811 = vunpack.c.h.b16 %v267
    %v812 = vunpack.c.l.b16 %v268
    %v813 = vunpack.c.h.b16 %v268
    %v814 = vunpack.c.l.b16 %v269
    %v815 = vunpack.c.h.b16 %v269
    %v816 = vunpack.c.l.b16 %v270
    %v817 = vunpack.c.h.b16 %v270
    %v818 = vunpack.c.l.b16 %v271
    %v819 = vunpack.c.h.b16 %v271
    %v820 = vunpack.c.l.b16 %v272
    %v821 = vunpack.c.h.b16 %v272
    %v822 = vunpack.c.l.b16 %v273
    %v823 = vunpack.c.h.b16 %v273
    %v824 = vunpack.c.l.b16 %v274
    %v825 = vunpack.c.h.b16 %v274
    %v826 = vunpack.c.l.b16 %v275
    %v827 = vunpack.c.h.b16 %v275
    %v828 = vunpack.c.l.b16 %v276
    %v829 = vunpack.c.h.b16 %v276
    %v830 = vunpack.c.l.b16 %v277
    %v831 = vunpack.c.h.b16 %v277
    %v832 = vunpack.c.l.b16 %v278
    %v833 = vunpack.c.h.b16 %v278
    %v834 = vunpack.c.l.b16 %v279
    %v835 = vunpack.c.h.b16 %v279
    %v836 = vunpack.c.l.b16 %v280
    %v837 = vunpack.c.h.b16 %v280
    %v838 = vunpack.c.l.b16 %v281
    %v839 = vunpack.c.h.b16 %v281
    %v840 = vunpack.c.l.b16 %v282
    %v841 = vunpack.c.h.b16 %v282
    %v842 = vunpack.c.l.b16 %v283
    %v843 = vunpack.c.h.b16 %v283
    %v844 = vunpack.c.l.b16 %v284
    %v845 = vunpack.c.h.b16 %v284
    %v846 = vunpack.c.l.b16 %v285
    %v847 = vunpack.c.h.b16 %v285
    %v848 = vunpack.c.l.b16 %v286
    %v849 = vunpack.c.h.b16 %v286
    %v850 = vunpack.c.l.b16 %v287
    %v851 = vunpack.c.h.b16 %v287
    %v852 = vunpack.c.l.b16 %v288
    %v853 = vunpack.c.h.b16 %v288
    %v854 = vunpack.c.l.b16 %v289
    %v855 = vunpack.c.h.b16 %v289
    %v856 = vunpack.c.l.b16 %v290
    %v857 = vunpack.c.h.b16 %v290
    %v858 = vunpack.c.l.b16 %v291
    %v859 = vunpack.c.h.b16 %v291
    %v860 = vunpack.c.l.b16 %v292
    %v861 = vunpack.c.h.b16 %v292
    %v862 = vunpack.c.l.b16 %v293
    %v863 = vunpack.c.h.b16 %v293
    %v864 = vunpack.c.l.b16 %v294
    %v865 = vunpack.c.h.b16 %v294
    %v866 = vunpack.c.l.b16 %v295
    %v867 = vunpack.c.h.b16 %v295
    %v868 = vunpack.c.l.b16 %v296
    %v869 = vunpack.c.h.b16 %v296
    %v870 = vunpack.c.l.b16 %v297
    %v871 = vunpack.c.h.b16 %v297
    %v872 = vunpack.c.l.b16 %v298
    %v873 = vunpack.c.h.b16 %v298
    %v874 = vunpack.c.l.b16 %v299
    %v875 = vunpack.c.h.b16 %v299
    %v876 = vunpack.c.l.b16 %v300
    %v877 = vunpack.c.h.b16 %v300
    %v878 = vunpack.c.l.b16 %v301
    %v879 = vunpack.c.h.b16 %v301
    %v880 = vunpack.c.l.b16 %v302
    %v881 = vunpack.c.h.b16 %v302
    %v882 = vunpack.c.l.b16 %v303
    %v883 = vunpack.c.h.b16 %v303
    %v884 = vunpack.c.l.b16 %v304
    %v885 = vunpack.c.h.b16 %v304
    %v886 = vunpack.c.l.b16 %v305
    %v887 = vunpack.c.h.b16 %v305
    %v888 = vunpack.c.l.b16 %v306
    %v889 = vunpack.c.h.b16 %v306
    %v890 = vunpack.c.l.b16 %v307
    %v891 = vunpack.c.h.b16 %v307
    %v892 = vunpack.c.l.b16 %v308
    %v893 = vunpack.c.h.b16 %v308
    %v894 = vunpack.c.l.b16 %v309
    %v895 = vunpack.c.h.b16 %v309
    %v896 = vunpack.c.l.b16 %v310
    %v897 = vunpack.c.h.b16 %v310
    %v898 = vunpack.c.l.b16 %v311
    %v899 = vunpack.c.h.b16 %v311
    %v900 = vunpack.c.l.b16 %v312
    %v901 = vunpack.c.h.b16 %v312
    %v902 = vunpack.c.l.b16 %v313
    %v903 = vunpack.c.h.b16 %v313
    %v904 = vunpack.c.l.b16 %v314
    %v905 = vunpack.c.h.b16 %v314
    %v906 = vunpack.c.l.b16 %v315
    %v907 = vunpack.c.h.b16 %v315
    %v908 = vunpack.c.l.b16 %v316
    %v909 = vunpack.c.h.b16 %v316
    %v910 = vunpack.c.l.b16 %v317
    %v911 = vunpack.c.h.b16 %v317
    %v912 = vunpack.c.l.b16 %v318
    %v913 = vunpack.c.h.b16 %v318
    %v914 = vunpack.c.l.b16 %v319
    %v915 = vunpack.c.h.b16 %v319
    %v916 = vunpack.c.l.b16 %v320
    %v917 = vunpack.c.h.b16 %v320
    %v918 = vunpack.c.l.b16 %v321
    %v919 = vunpack.c.h.b16 %v321
    %v920 = vunpack.c.l.b16 %v322
    %v921 = vunpack.c.h.b16 %v322
    %v922 = vunpack.c.l.b16 %v323
    %v923 = vunpack.c.h.b16 %v323
    %v924 = vunpack.c.l.b16 %v324
    %v925 = vunpack.c.h.b16 %v324
    %v926 = vunpack.c.l.b16 %v325
    %v927 = vunpack.c.h.b16 %v325
    %v928 = vunpack.c.l.b16 %v326
    %v929 = vunpack.c.h.b16 %v326
    %v930 = vunpack.c.l.b16 %v327
    %v931 = vunpack.c.h.b16 %v327
    %v932 = vunpack.c.l.b16 %v328
    %v933 = vunpack.c.h.b16 %v328
    %v934 = vunpack.c.l.b16 %v329
    %v935 = vunpack.c.h.b16 %v329
    %v936 = vunpack.c.l.b16 %v330
    %v937 = vunpack.c.h.b16 %v330
    %v938 = vpack.c.b16 %v558, %v554
    %v939 = vpack.c.b16 %v559, %v555
    %v940 = vpack.c.b16 %v560, %v556
    %v941 = vpack.c.b16 %v561, %v557
    %v942 = vpack.c.b16 %v566, %v562
    %v943 = vpack.c.b16 %v567, %v563
    %v944 = vpack.c.b16 %v568, %v564
    %v945 = vpack.c.b16 %v569, %v565
    %v946 = vpack.c.b16 %v574, %v570
    %v947 = vpack.c.b16 %v575, %v571
    %v948 = vpack.c.b16 %v576, %v572
    %v949 = vpack.c.b16 %v577, %v573
    %v950 = vpack.c.b16 %v582, %v578
    %v951 = vpack.c.b16 %v583, %v579
    %v952 = vpack.c.b16 %v584, %v580
    %v953 = vpack.c.b16 %v585, %v581
    %v954 = vpack.c.b16 %v590, %v586
    %v955 = vpack.c.b16 %v591, %v587
    %v956 = vpack.c.b16 %v592, %v588
    %v957 = vpack.c.b16 %v593, %v589
    %v958 = vpack.c.b16 %v598, %v594
    %v959 = vpack.c.b16 %v599, %v595
    %v960 = vpack.c.b16 %v600, %v596
    %v961 = vpack.c.b16 %v601, %v597
    %v962 = vpack.c.b16 %v606, %v602
    %v963 = vpack.c.b16 %v607, %v603
    %v964 = vpack.c.b16 %v608, %v604
    %v965 = vpack.c.b16 %v609, %v605
    %v966 = vpack.c.b16 %v614, %v610
    %v967 = vpack.c.b16 %v615, %v611
    %v968 = vpack.c.b16 %v616, %v612
    %v969 = vpack.c.b16 %v617, %v613
    %v970 = vpack.c.b16 %v622, %v618
    %v971 = vpack.c.b16 %v623, %v619
    %v972 = vpack.c.b16 %v624, %v620
    %v973 = vpack.c.b16 %v625, %v621
    %v974 = vpack.c.b16 %v630, %v626
    %v975 = vpack.c.b16 %v631, %v627
    %v976 = vpack.c.b16 %v632, %v628
    %v977 = vpack.c.b16 %v633, %v629
    %v978 = vpack.c.b16 %v638, %v634
    %v979 = vpack.c.b16 %v639, %v635
    %v980 = vpack.c.b16 %v640, %v636
    %v981 = vpack.c.b16 %v641, %v637
    %v982 = vpack.c.b16 %v646, %v642
    %v983 = vpack.c.b16 %v647, %v643
    %v984 = vpack.c.b16 %v648, %v644
    %v985 = vpack.c.b16 %v649, %v645
    %v986 = vpack.c.b16 %v654, %v650
    %v987 = vpack.c.b16 %v655, %v651
    %v988 = vpack.c.b16 %v656, %v652
    %v989 = vpack.c.b16 %v657, %v653
    %v990 = vpack.c.b16 %v662, %v658
    %v991 = vpack.c.b16 %v663, %v659
    %v992 = vpack.c.b16 %v664, %v660
    %v993 = vpack.c.b16 %v665, %v661
    %v994 = vpack.c.b16 %v670, %v666
    %v995 = vpack.c.b16 %v671, %v667
    %v996 = vpack.c.b16 %v672, %v668
    %v997 = vpack.c.b16 %v673, %v669
    %v998 = vpack.c.b16 %v678, %v674
    %v999 = vpack.c.b16 %v679, %v675
    %v1000 = vpack.c.b16 %v680, %v676
    %v1001 = vpack.c.b16 %v681, %v677
    %v1002 = vpack.c.b16 %v686, %v682
    %v1003 = vpack.c.b16 %v687, %v683
    %v1004 = vpack.c.b16 %v688, %v684
    %v1005 = vpack.c.b16 %v689, %v685
    %v1006 = vpack.c.b16 %v694, %v690
    %v1007 = vpack.c.b16 %v695, %v691
    %v1008 = vpack.c.b16 %v696, %v692
    %v1009 = vpack.c.b16 %v697, %v693
    %v1010 = vpack.c.b16 %v702, %v698
    %v1011 = vpack.c.b16 %v703, %v699
    %v1012 = vpack.c.b16 %v704, %v700
    %v1013 = vpack.c.b16 %v705, %v701
    %v1014 = vpack.c.b16 %v710, %v706
    %v1015 = vpack.c.b16 %v711, %v707
    %v1016 = vpack.c.b16 %v712, %v708
    %v1017 = vpack.c.b16 %v713, %v709
    %v1018 = vpack.c.b16 %v718, %v714
    %v1019 = vpack.c.b16 %v719, %v715
    %v1020 = vpack.c.b16 %v720, %v716
    %v1021 = vpack.c.b16 %v721, %v717
    %v1022 = vpack.c.b16 %v726, %v722
    %v1023 = vpack.c.b16 %v727, %v723
    %v1024 = vpack.c.b16 %v728, %v724
    %v1025 = vpack.c.b16 %v729, %v725
    %v1026 = vpack.c.b16 %v734, %v730
    %v1027 = vpack.c.b16 %v735, %v731
    %v1028 = vpack.c.b16 %v736, %v732
    %v1029 = vpack.c.b16 %v737, %v733
    %v1030 = vpack.c.b16 %v742, %v738
    %v1031 = vpack.c.b16 %v743, %v739
    %v1032 = vpack.c.b16 %v744, %v740
    %v1033 = vpack.c.b16 %v745, %v741
    %v1034 = vpack.c.b16 %v750, %v746
    %v1035 = vpack.c.b16 %v751, %v747
    %v1036 = vpack.c.b16 %v752, %v748
    %v1037 = vpack.c.b16 %v753, %v749
    %v1038 = vpack.c.b16 %v758, %v754
    %v1039 = vpack.c.b16 %v759, %v755
    %v1040 = vpack.c.b16 %v760, %v756
    %v1041 = vpack.c.b16 %v761, %v757
    %v1042 = vpack.c.b16 %v766, %v762
    %v1043 = vpack.c.b16 %v767, %v763
    %v1044 = vpack.c.b16 %v768, %v764
    %v1045 = vpack.c.b16 %v769, %v765
    %v1046 = vpack.c.b16 %v774, %v770
    %v1047 = vpack.c.b16 %v775, %v771
    %v1048 = vpack.c.b16 %v776, %v772
    %v1049 = vpack.c.b16 %v777, %v773
    %v1050 = vpack.c.b16 %v782, %v778
    %v1051 = vpack.c.b16 %v783, %v779
    %v1052 = vpack.c.b16 %v784, %v780
    %v1053 = vpack.c.b16 %v785, %v781
    %v1054 = vpack.c.b16 %v790, %v786
    %v1055 = vpack.c.b16 %v791, %v787
    %v1056 = vpack.c.b16 %v792, %v788
    %v1057 = vpack.c.b16 %v793, %v789
    %v1058 = vpack.c.b16 %v798, %v794
    %v1059 = vpack.c.b16 %v799, %v795
    %v1060 = vpack.c.b16 %v800, %v796
    %v1061 = vpack.c.b16 %v801, %v797
    %v1062 = vpack.c.b16 %v806, %v802
    %v1063 = vpack.c.b16 %v807, %v803
    %v1064 = vpack.c.b16 %v808, %v804
    %v1065 = vpack.c.b16 %v809, %v805
    %v1066 = vpack.c.b16 %v814, %v810
    %v1067 = vpack.c.b16 %v815, %v811
    %v1068 = vpack.c.b16 %v816, %v812
    %v1069 = vpack.c.b16 %v817, %v813
    %v1070 = vpack.c.b16 %v822, %v818
    %v1071 = vpack.c.b16 %v823, %v819
    %v1072 = vpack.c.b16 %v824, %v820
    %v1073 = vpack.c.b16 %v825, %v821
    %v1074 = vpack.c.b16 %v830, %v826
    %v1075 = vpack.c.b16 %v831, %v827
    %v1076 = vpack.c.b16 %v832, %v828
    %v1077 = vpack.c.b16 %v833, %v829
    %v1078 = vpack.c.b16 %v838, %v834
    %v1079 = vpack.c.b16 %v839, %v835
    %v1080 = vpack.c.b16 %v840, %v836
    %v1081 = vpack.c.b16 %v841, %v837
    %v1082 = vpack.c.b16 %v846, %v842
    %v1083 = vpack.c.b16 %v847, %v843
    %v1084 = vpack.c.b16 %v848, %v844
    %v1085 = vpack.c.b16 %v849, %v845
    %v1086 = vpack.c.b16 %v854, %v850
    %v1087 = vpack.c.b16 %v855, %v851
    %v1088 = vpack.c.b16 %v856, %v852
    %v1089 = vpack.c.b16 %v857, %v853
    %v1090 = vpack.c.b16 %v862, %v858
    %v1091 = vpack.c.b16 %v863, %v859
    %v1092 = vpack.c.b16 %v864, %v860
    %v1093 = vpack.c.b16 %v865, %v861
    %v1094 = vpack.c.b16 %v870, %v866
    %v1095 = vpack.c.b16 %v871, %v867
    %v1096 = vpack.c.b16 %v872, %v868
    %v1097 = vpack.c.b16 %v873, %v869
    %v1098 = vpack.c.b16 %v878, %v874
    %v1099 = vpack.c.b16 %v879, %v875
    %v1100 = vpack.c.b16 %v880, %v876
    %v1101 = vpack.c.b16 %v881, %v877
    %v1102 = vpack.c.b16 %v886, %v882
    %v1103 = vpack.c.b16 %v887, %v883
    %v1104 = vpack.c.b16 %v888, %v884
    %v1105 = vpack.c.b16 %v889, %v885
    %v1106 = vpack.c.b16 %v894, %v890
    %v1107 = vpack.c.b16 %v895, %v891
    %v1108 = vpack.c.b16 %v896, %v892
    %v1109 = vpack.c.b16 %v897, %v893
    %v1110 = vpack.c.b16 %v902, %v898
    %v1111 = vpack.c.b16 %v903, %v899
    %v1112 = vpack.c.b16 %v904, %v900
    %v1113 = vpack.c.b16 %v905, %v901
    %v1114 = vpack.c.b16 %v910, %v906
    %v1115 = vpack.c.b16 %v911, %v907
    %v1116 = vpack.c.b16 %v912, %v908
    %v1117 = vpack.c.b16 %v913, %v909
    %v1118 = vpack.c.b16 %v918, %v914
    %v1119 = vpack.c.b16 %v919, %v915
    %v1120 = vpack.c.b16 %v920, %v916
    %v1121 = vpack.c.b16 %v921, %v917
    %v1122 = vpack.c.b16 %v926, %v922
    %v1123 = vpack.c.b16 %v927, %v923
    %v1124 = vpack.c.b16 %v928, %v924
    %v1125 = vpack.c.b16 %v929, %v925
    %v1126 = vpack.c.b16 %v934, %v930
    %v1127 = vpack.c.b16 %v935, %v931
    %v1128 = vpack.c.b16 %v936, %v932
    %v1129 = vpack.c.b16 %v937, %v933
    %1322 = vmatpush.bf16.msra.mxu0 %v966
    %1323 = vmatpush.bf16.msra.mxu0 %v962
    %1324 = vmatpush.bf16.msra.mxu0 %v958
    %1325 = vmatpush.bf16.msra.mxu0 %v954
    %1326 = vmatpush.bf16.msra.mxu0 %v950
    %1327 = vmatpush.bf16.msra.mxu0 %v946
    %1328 = vmatpush.bf16.msra.mxu0 %v942
    %1329 = vmatpush.bf16.msra.mxu0 %v938
    %1330 = vmatmul.bf16.gmra.mxu0 %v350
    %v1331 = vpop.f32.mrf.mxu0
    %v1332 = vadd.f32 %v333, %v1331
    %v1333 = vpop.f32.mrf.mxu0
    %1334 = vdwg.mxu0
    %1335 = vmatpush.bf16.msra.mxu0 %v998
    %1336 = vmatpush.bf16.msra.mxu0 %v994
    %1337 = vmatpush.bf16.msra.mxu0 %v990
    %1338 = vmatpush.bf16.msra.mxu0 %v986
    %1339 = vmatpush.bf16.msra.mxu0 %v982
    %1340 = vmatpush.bf16.msra.mxu0 %v978
    %1341 = vmatpush.bf16.msra.mxu0 %v974
    %1342 = vmatpush.bf16.msra.mxu0 %v970
    %1343 = vmatmul.bf16.gmra.mxu0 %v351
    %v1344 = vpop.f32.mrf.mxu0
    %v1345 = vadd.f32 %v1332, %v1344
    %v1346 = vpop.f32.mrf.mxu0
    %1347 = vdwg.mxu0
    %1348 = vmatpush.bf16.msra.mxu0 %v1030
    %1349 = vmatpush.bf16.msra.mxu0 %v1026
    %1350 = vmatpush.bf16.msra.mxu0 %v1022
    %1351 = vmatpush.bf16.msra.mxu0 %v1018
    %1352 = vmatpush.bf16.msra.mxu0 %v1014
    %1353 = vmatpush.bf16.msra.mxu0 %v1010
    %1354 = vmatpush.bf16.msra.mxu0 %v1006
    %1355 = vmatpush.bf16.msra.mxu0 %v1002
    %1356 = vmatmul.bf16.gmra.mxu0 %v352
    %v1357 = vpop.f32.mrf.mxu0
    %v1358 = vadd.f32 %v1345, %v1357
    %v1359 = vpop.f32.mrf.mxu0
    %1360 = vdwg.mxu0
    %1361 = vmatpush.bf16.msra.mxu0 %v1062
    %1362 = vmatpush.bf16.msra.mxu0 %v1058
    %1363 = vmatpush.bf16.msra.mxu0 %v1054
    %1364 = vmatpush.bf16.msra.mxu0 %v1050
    %1365 = vmatpush.bf16.msra.mxu0 %v1046
    %1366 = vmatpush.bf16.msra.mxu0 %v1042
    %1367 = vmatpush.bf16.msra.mxu0 %v1038
    %1368 = vmatpush.bf16.msra.mxu0 %v1034
    %1369 = vmatmul.bf16.gmra.mxu0 %v353
    %v1370 = vpop.f32.mrf.mxu0
    %v1371 = vadd.f32 %v1358, %v1370
    %v1372 = vpop.f32.mrf.mxu0
    %1373 = vdwg.mxu0
    %1374 = vmatpush.bf16.msra.mxu0 %v1094
    %1375 = vmatpush.bf16.msra.mxu0 %v1090
    %1376 = vmatpush.bf16.msra.mxu0 %v1086
    %1377 = vmatpush.bf16.msra.mxu0 %v1082
    %1378 = vmatpush.bf16.msra.mxu0 %v1078
    %1379 = vmatpush.bf16.msra.mxu0 %v1074
    %1380 = vmatpush.bf16.msra.mxu0 %v1070
    %1381 = vmatpush.bf16.msra.mxu0 %v1066
    %1382 = vmatmul.bf16.gmra.mxu0 %v354
    %v1383 = vpop.f32.mrf.mxu0
    %v1384 = vadd.f32 %v1371, %v1383
    %v1385 = vpop.f32.mrf.mxu0
    %1386 = vdwg.mxu0
    %1387 = vmatpush.bf16.msra.mxu0 %v1126
    %1388 = vmatpush.bf16.msra.mxu0 %v1122
    %1389 = vmatpush.bf16.msra.mxu0 %v1118
    %1390 = vmatpush.bf16.msra.mxu0 %v1114
    %1391 = vmatpush.bf16.msra.mxu0 %v1110
    %1392 = vmatpush.bf16.msra.mxu0 %v1106
    %1393 = vmatpush.bf16.msra.mxu0 %v1102
    %1394 = vmatpush.bf16.msra.mxu0 %v1098
    %1395 = vmatmul.bf16.gmra.mxu0 %v355
    %v1396 = vpop.f32.mrf.mxu0
    %v1397 = vadd.f32 %v1384, %v1396
    %v1398 = vpop.f32.mrf.mxu0
    %1399 = vdwg.mxu0
    %1400 = vmatpush.bf16.msra.mxu0 %v967
    %1401 = vmatpush.bf16.msra.mxu0 %v963
    %1402 = vmatpush.bf16.msra.mxu0 %v959
    %1403 = vmatpush.bf16.msra.mxu0 %v955
    %1404 = vmatpush.bf16.msra.mxu0 %v951
    %1405 = vmatpush.bf16.msra.mxu0 %v947
    %1406 = vmatpush.bf16.msra.mxu0 %v943
    %1407 = vmatpush.bf16.msra.mxu0 %v939
    %1408 = vmatmul.bf16.gmra.mxu0 %v350
    %v1409 = vpop.f32.mrf.mxu0
    %v1410 = vadd.f32 %v334, %v1409
    %v1411 = vpop.f32.mrf.mxu0
    %1412 = vdwg.mxu0
    %1413 = vmatpush.bf16.msra.mxu0 %v999
    %1414 = vmatpush.bf16.msra.mxu0 %v995
    %1415 = vmatpush.bf16.msra.mxu0 %v991
    %1416 = vmatpush.bf16.msra.mxu0 %v987
    %1417 = vmatpush.bf16.msra.mxu0 %v983
    %1418 = vmatpush.bf16.msra.mxu0 %v979
    %1419 = vmatpush.bf16.msra.mxu0 %v975
    %1420 = vmatpush.bf16.msra.mxu0 %v971
    %1421 = vmatmul.bf16.gmra.mxu0 %v351
    %v1422 = vpop.f32.mrf.mxu0
    %v1423 = vadd.f32 %v1410, %v1422
    %v1424 = vpop.f32.mrf.mxu0
    %1425 = vdwg.mxu0
    %1426 = vmatpush.bf16.msra.mxu0 %v1031
    %1427 = vmatpush.bf16.msra.mxu0 %v1027
    %1428 = vmatpush.bf16.msra.mxu0 %v1023
    %1429 = vmatpush.bf16.msra.mxu0 %v1019
    %1430 = vmatpush.bf16.msra.mxu0 %v1015
    %1431 = vmatpush.bf16.msra.mxu0 %v1011
    %1432 = vmatpush.bf16.msra.mxu0 %v1007
    %1433 = vmatpush.bf16.msra.mxu0 %v1003
    %1434 = vmatmul.bf16.gmra.mxu0 %v352
    %v1435 = vpop.f32.mrf.mxu0
    %v1436 = vadd.f32 %v1423, %v1435
    %v1437 = vpop.f32.mrf.mxu0
    %1438 = vdwg.mxu0
    %1439 = vmatpush.bf16.msra.mxu0 %v1063
    %1440 = vmatpush.bf16.msra.mxu0 %v1059
    %1441 = vmatpush.bf16.msra.mxu0 %v1055
    %1442 = vmatpush.bf16.msra.mxu0 %v1051
    %1443 = vmatpush.bf16.msra.mxu0 %v1047
    %1444 = vmatpush.bf16.msra.mxu0 %v1043
    %1445 = vmatpush.bf16.msra.mxu0 %v1039
    %1446 = vmatpush.bf16.msra.mxu0 %v1035
    %1447 = vmatmul.bf16.gmra.mxu0 %v353
    %v1448 = vpop.f32.mrf.mxu0
    %v1449 = vadd.f32 %v1436, %v1448
    %v1450 = vpop.f32.mrf.mxu0
    %1451 = vdwg.mxu0
    %1452 = vmatpush.bf16.msra.mxu0 %v1095
    %1453 = vmatpush.bf16.msra.mxu0 %v1091
    %1454 = vmatpush.bf16.msra.mxu0 %v1087
    %1455 = vmatpush.bf16.msra.mxu0 %v1083
    %1456 = vmatpush.bf16.msra.mxu0 %v1079
    %1457 = vmatpush.bf16.msra.mxu0 %v1075
    %1458 = vmatpush.bf16.msra.mxu0 %v1071
    %1459 = vmatpush.bf16.msra.mxu0 %v1067
    %1460 = vmatmul.bf16.gmra.mxu0 %v354
    %v1461 = vpop.f32.mrf.mxu0
    %v1462 = vadd.f32 %v1449, %v1461
    %v1463 = vpop.f32.mrf.mxu0
    %1464 = vdwg.mxu0
    %1465 = vmatpush.bf16.msra.mxu0 %v1127
    %1466 = vmatpush.bf16.msra.mxu0 %v1123
    %1467 = vmatpush.bf16.msra.mxu0 %v1119
    %1468 = vmatpush.bf16.msra.mxu0 %v1115
    %1469 = vmatpush.bf16.msra.mxu0 %v1111
    %1470 = vmatpush.bf16.msra.mxu0 %v1107
    %1471 = vmatpush.bf16.msra.mxu0 %v1103
    %1472 = vmatpush.bf16.msra.mxu0 %v1099
    %1473 = vmatmul.bf16.gmra.mxu0 %v355
    %v1474 = vpop.f32.mrf.mxu0
    %v1475 = vadd.f32 %v1462, %v1474
    %v1476 = vpop.f32.mrf.mxu0
    %1477 = vdwg.mxu0
    %1478 = vmatpush.bf16.msra.mxu0 %v968
    %1479 = vmatpush.bf16.msra.mxu0 %v964
    %1480 = vmatpush.bf16.msra.mxu0 %v960
    %1481 = vmatpush.bf16.msra.mxu0 %v956
    %1482 = vmatpush.bf16.msra.mxu0 %v952
    %1483 = vmatpush.bf16.msra.mxu0 %v948
    %1484 = vmatpush.bf16.msra.mxu0 %v944
    %1485 = vmatpush.bf16.msra.mxu0 %v940
    %1486 = vmatmul.bf16.gmra.mxu0 %v350
    %v1487 = vpop.f32.mrf.mxu0
    %v1488 = vadd.f32 %v335, %v1487
    %v1489 = vpop.f32.mrf.mxu0
    %1490 = vdwg.mxu0
    %1491 = vmatpush.bf16.msra.mxu0 %v1000
    %1492 = vmatpush.bf16.msra.mxu0 %v996
    %1493 = vmatpush.bf16.msra.mxu0 %v992
    %1494 = vmatpush.bf16.msra.mxu0 %v988
    %1495 = vmatpush.bf16.msra.mxu0 %v984
    %1496 = vmatpush.bf16.msra.mxu0 %v980
    %1497 = vmatpush.bf16.msra.mxu0 %v976
    %1498 = vmatpush.bf16.msra.mxu0 %v972
    %1499 = vmatmul.bf16.gmra.mxu0 %v351
    %v1500 = vpop.f32.mrf.mxu0
    %v1501 = vadd.f32 %v1488, %v1500
    %v1502 = vpop.f32.mrf.mxu0
    %1503 = vdwg.mxu0
    %1504 = vmatpush.bf16.msra.mxu0 %v1032
    %1505 = vmatpush.bf16.msra.mxu0 %v1028
    %1506 = vmatpush.bf16.msra.mxu0 %v1024
    %1507 = vmatpush.bf16.msra.mxu0 %v1020
    %1508 = vmatpush.bf16.msra.mxu0 %v1016
    %1509 = vmatpush.bf16.msra.mxu0 %v1012
    %1510 = vmatpush.bf16.msra.mxu0 %v1008
    %1511 = vmatpush.bf16.msra.mxu0 %v1004
    %1512 = vmatmul.bf16.gmra.mxu0 %v352
    %v1513 = vpop.f32.mrf.mxu0
    %v1514 = vadd.f32 %v1501, %v1513
    %v1515 = vpop.f32.mrf.mxu0
    %1516 = vdwg.mxu0
    %1517 = vmatpush.bf16.msra.mxu0 %v1064
    %1518 = vmatpush.bf16.msra.mxu0 %v1060
    %1519 = vmatpush.bf16.msra.mxu0 %v1056
    %1520 = vmatpush.bf16.msra.mxu0 %v1052
    %1521 = vmatpush.bf16.msra.mxu0 %v1048
    %1522 = vmatpush.bf16.msra.mxu0 %v1044
    %1523 = vmatpush.bf16.msra.mxu0 %v1040
    %1524 = vmatpush.bf16.msra.mxu0 %v1036
    %1525 = vmatmul.bf16.gmra.mxu0 %v353
    %v1526 = vpop.f32.mrf.mxu0
    %v1527 = vadd.f32 %v1514, %v1526
    %v1528 = vpop.f32.mrf.mxu0
    %1529 = vdwg.mxu0
    %1530 = vmatpush.bf16.msra.mxu0 %v1096
    %1531 = vmatpush.bf16.msra.mxu0 %v1092
    %1532 = vmatpush.bf16.msra.mxu0 %v1088
    %1533 = vmatpush.bf16.msra.mxu0 %v1084
    %1534 = vmatpush.bf16.msra.mxu0 %v1080
    %1535 = vmatpush.bf16.msra.mxu0 %v1076
    %1536 = vmatpush.bf16.msra.mxu0 %v1072
    %1537 = vmatpush.bf16.msra.mxu0 %v1068
    %1538 = vmatmul.bf16.gmra.mxu0 %v354
    %v1539 = vpop.f32.mrf.mxu0
    %v1540 = vadd.f32 %v1527, %v1539
    %v1541 = vpop.f32.mrf.mxu0
    %1542 = vdwg.mxu0
    %1543 = vmatpush.bf16.msra.mxu0 %v1128
    %1544 = vmatpush.bf16.msra.mxu0 %v1124
    %1545 = vmatpush.bf16.msra.mxu0 %v1120
    %1546 = vmatpush.bf16.msra.mxu0 %v1116
    %1547 = vmatpush.bf16.msra.mxu0 %v1112
    %1548 = vmatpush.bf16.msra.mxu0 %v1108
    %1549 = vmatpush.bf16.msra.mxu0 %v1104
    %1550 = vmatpush.bf16.msra.mxu0 %v1100
    %1551 = vmatmul.bf16.gmra.mxu0 %v355
    %v1552 = vpop.f32.mrf.mxu0
    %v1553 = vadd.f32 %v1540, %v1552
    %v1554 = vpop.f32.mrf.mxu0
    %1555 = vdwg.mxu0
    %1556 = vmatpush.bf16.msra.mxu0 %v969
    %1557 = vmatpush.bf16.msra.mxu0 %v965
    %1558 = vmatpush.bf16.msra.mxu0 %v961
    %1559 = vmatpush.bf16.msra.mxu0 %v957
    %1560 = vmatpush.bf16.msra.mxu0 %v953
    %1561 = vmatpush.bf16.msra.mxu0 %v949
    %1562 = vmatpush.bf16.msra.mxu0 %v945
    %1563 = vmatpush.bf16.msra.mxu0 %v941
    %1564 = vmatmul.bf16.gmra.mxu0 %v350
    %v1565 = vpop.f32.mrf.mxu0
    %v1566 = vadd.f32 %v336, %v1565
    %v1567 = vpop.f32.mrf.mxu0
    %1568 = vdwg.mxu0
    %1569 = vmatpush.bf16.msra.mxu0 %v1001
    %1570 = vmatpush.bf16.msra.mxu0 %v997
    %1571 = vmatpush.bf16.msra.mxu0 %v993
    %1572 = vmatpush.bf16.msra.mxu0 %v989
    %1573 = vmatpush.bf16.msra.mxu0 %v985
    %1574 = vmatpush.bf16.msra.mxu0 %v981
    %1575 = vmatpush.bf16.msra.mxu0 %v977
    %1576 = vmatpush.bf16.msra.mxu0 %v973
    %1577 = vmatmul.bf16.gmra.mxu0 %v351
    %v1578 = vpop.f32.mrf.mxu0
    %v1579 = vadd.f32 %v1566, %v1578
    %v1580 = vpop.f32.mrf.mxu0
    %1581 = vdwg.mxu0
    %1582 = vmatpush.bf16.msra.mxu0 %v1033
    %1583 = vmatpush.bf16.msra.mxu0 %v1029
    %1584 = vmatpush.bf16.msra.mxu0 %v1025
    %1585 = vmatpush.bf16.msra.mxu0 %v1021
    %1586 = vmatpush.bf16.msra.mxu0 %v1017
    %1587 = vmatpush.bf16.msra.mxu0 %v1013
    %1588 = vmatpush.bf16.msra.mxu0 %v1009
    %1589 = vmatpush.bf16.msra.mxu0 %v1005
    %1590 = vmatmul.bf16.gmra.mxu0 %v352
    %v1591 = vpop.f32.mrf.mxu0
    %v1592 = vadd.f32 %v1579, %v1591
    %v1593 = vpop.f32.mrf.mxu0
    %1594 = vdwg.mxu0
    %1595 = vmatpush.bf16.msra.mxu0 %v1065
    %1596 = vmatpush.bf16.msra.mxu0 %v1061
    %1597 = vmatpush.bf16.msra.mxu0 %v1057
    %1598 = vmatpush.bf16.msra.mxu0 %v1053
    %1599 = vmatpush.bf16.msra.mxu0 %v1049
    %1600 = vmatpush.bf16.msra.mxu0 %v1045
    %1601 = vmatpush.bf16.msra.mxu0 %v1041
    %1602 = vmatpush.bf16.msra.mxu0 %v1037
    %1603 = vmatmul.bf16.gmra.mxu0 %v353
    %v1604 = vpop.f32.mrf.mxu0
    %v1605 = vadd.f32 %v1592, %v1604
    %v1606 = vpop.f32.mrf.mxu0
    %1607 = vdwg.mxu0
    %1608 = vmatpush.bf16.msra.mxu0 %v1097
    %1609 = vmatpush.bf16.msra.mxu0 %v1093
    %1610 = vmatpush.bf16.msra.mxu0 %v1089
    %1611 = vmatpush.bf16.msra.mxu0 %v1085
    %1612 = vmatpush.bf16.msra.mxu0 %v1081
    %1613 = vmatpush.bf16.msra.mxu0 %v1077
    %1614 = vmatpush.bf16.msra.mxu0 %v1073
    %1615 = vmatpush.bf16.msra.mxu0 %v1069
    %1616 = vmatmul.bf16.gmra.mxu0 %v354
    %v1617 = vpop.f32.mrf.mxu0
    %v1618 = vadd.f32 %v1605, %v1617
    %v1619 = vpop.f32.mrf.mxu0
    %1620 = vdwg.mxu0
    %1621 = vmatpush.bf16.msra.mxu0 %v1129
    %1622 = vmatpush.bf16.msra.mxu0 %v1125
    %1623 = vmatpush.bf16.msra.mxu0 %v1121
    %1624 = vmatpush.bf16.msra.mxu0 %v1117
    %1625 = vmatpush.bf16.msra.mxu0 %v1113
    %1626 = vmatpush.bf16.msra.mxu0 %v1109
    %1627 = vmatpush.bf16.msra.mxu0 %v1105
    %1628 = vmatpush.bf16.msra.mxu0 %v1101
    %1629 = vmatmul.bf16.gmra.mxu0 %v355
    %v1630 = vpop.f32.mrf.mxu0
    %v1631 = vadd.f32 %v1618, %v1630
    %v1632 = vpop.f32.mrf.mxu0
    %1633 = vdwg.mxu0
    %v1634 = vadd.f32 %v1397, %v1475
    %v1635 = vadd.f32 %v1634, %v1553
    %v1636 = vadd.f32 %v1635, %v1631
    %1637 = vadd.xlane.f32.xlu0 %v1636
    %v1638 = vpop.xlane.xlu0 %1637
    %v1639 = vmul.f32 %v1397, %v1397
    %v1640 = vmul.f32 %v1475, %v1475
    %v1641 = vmul.f32 %v1553, %v1553
    %v1642 = vmul.f32 %v1631, %v1631
    %v1643 = vadd.f32 %v1639, %v1640
    %v1644 = vadd.f32 %v1643, %v1641
    %v1645 = vadd.f32 %v1644, %v1642
    %1646 = vadd.xlane.f32.xlu0 %v1645
    %v1647 = vpop.xlane.xlu0 %1646
    %v1648 = vmul.f32 %v1638, 0.001953125
    %v1649 = vmul.f32 %v1647, 0.001953125
    %v1650 = vmul.f32 %v1648, %v1648
    %v1651 = vsub.f32 %v1649, %v1650
    %v1652 = vadd.f32 %v1651, 1e-05
    %v1653 = vrsqrt.pop %v1652
    %v1654 = vmul.f32 %v1653, %v1652
    %v1655 = vmul.f32 %v1654, %v1653
    %v1656 = vmul.f32 0.5, %v1655
    %v1657 = vsub.f32 1.5, %v1656
    %v1658 = vmul.f32 %v1653, %v1657
    %vm1659 = vweird.f32 %v1652
    %vm1660 = vweird.f32 %v1653
    %vm1661 = vmor %vm1659, %vm1660
    %v1662 = vsel %vm1661, %v1653, %v1658
    %s1663 = scalar_lea.vmem [#allocation7], 1
    %v1664 = vld [vmem:[%s1663] ss:$4 sm:$0xf]
    %s1665 = scalar_lea.vmem [#allocation7], 2
    %v1666 = vld [vmem:[%s1665] ss:$4 sm:$0xf]
    %v1668 = vperm.slane %v1664, 0
    %v1669 = vperm.slane %v1664, 1
    %v1670 = vperm.slane %v1664, 2
    %v1671 = vperm.slane %v1664, 3
    %v1676 = vpack.c.bf16 %v1669, %v1668
    %v1677 = vpack.c.bf16 %v1671, %v1670
    %v1678 = vpack.c.bf16 %v1662, %v1662
    %v1681 = vunpack.c.l.b16 %v1676
    %v1682 = vunpack.c.h.b16 %v1676
    %v1683 = vunpack.c.l.b16 %v1677
    %v1684 = vunpack.c.h.b16 %v1677
    %v1685 = vpack.c.b16 %v1681, %v1681
    %v1686 = vpack.c.b16 %v1682, %v1682
    %v1687 = vpack.c.b16 %v1683, %v1683
    %v1688 = vpack.c.b16 %v1684, %v1684
    %v1690 = vpack.i.b16 %v1685, %v1685
    %v1692 = vperm.slane %v1690, 0
    %v1694 = vpack.i.b16 %v1686, %v1686
    %v1696 = vperm.slane %v1694, 0
    %v1698 = vpack.i.b16 %v1687, %v1687
    %v1700 = vperm.slane %v1698, 0
    %v1702 = vpack.i.b16 %v1688, %v1688
    %v1704 = vperm.slane %v1702, 0
    %v1705 = vunpack.c.l.bf16 %v1692
    %v1706 = vunpack.c.l.bf16 %v1696
    %v1707 = vunpack.c.l.bf16 %v1700
    %v1708 = vunpack.c.l.bf16 %v1704
    %v1709 = vunpack.c.l.bf16 %v1678
    %v1710 = vmul.f32 %v1705, %v1709
    %v1711 = vmul.f32 %v1706, %v1709
    %v1712 = vmul.f32 %v1707, %v1709
    %v1713 = vmul.f32 %v1708, %v1709
    %v1714 = vpack.c.bf16 %v1711, %v1710
    %v1715 = vpack.c.bf16 %v1713, %v1712
    %v1716 = vpack.c.bf16 %v1475, %v1397
    %v1717 = vpack.c.bf16 %v1631, %v1553
    %v1718 = vpack.c.bf16 %v1648, %v1648
    %v1719 = vunpack.c.l.bf16 %v1716
    %v1720 = vunpack.c.h.bf16 %v1716
    %v1721 = vunpack.c.l.bf16 %v1717
    %v1722 = vunpack.c.h.bf16 %v1717
    %v1723 = vunpack.c.l.bf16 %v1718
    %v1724 = vsub.f32 %v1719, %v1723
    %v1725 = vsub.f32 %v1720, %v1723
    %v1726 = vsub.f32 %v1721, %v1723
    %v1727 = vsub.f32 %v1722, %v1723
    %v1728 = vpack.c.bf16 %v1725, %v1724
    %v1729 = vpack.c.bf16 %v1727, %v1726
    %v1730 = vunpack.c.l.bf16 %v1728
    %v1731 = vunpack.c.h.bf16 %v1728
    %v1732 = vunpack.c.l.bf16 %v1729
    %v1733 = vunpack.c.h.bf16 %v1729
    %v1734 = vunpack.c.l.bf16 %v1714
    %v1735 = vunpack.c.h.bf16 %v1714
    %v1736 = vunpack.c.l.bf16 %v1715
    %v1737 = vunpack.c.h.bf16 %v1715
    %v1738 = vmul.f32 %v1730, %v1734
    %v1739 = vmul.f32 %v1731, %v1735
    %v1740 = vmul.f32 %v1732, %v1736
    %v1741 = vmul.f32 %v1733, %v1737
    %v1742 = vpack.c.bf16 %v1739, %v1738
    %v1743 = vpack.c.bf16 %v1741, %v1740
    %v1745 = vperm.slane %v1666, 0
    %v1746 = vperm.slane %v1666, 1
    %v1747 = vperm.slane %v1666, 2
    %v1748 = vperm.slane %v1666, 3
    %v1753 = vpack.c.bf16 %v1746, %v1745
    %v1754 = vpack.c.bf16 %v1748, %v1747
    %v1757 = vunpack.c.l.b16 %v1753
    %v1758 = vunpack.c.h.b16 %v1753
    %v1759 = vunpack.c.l.b16 %v1754
    %v1760 = vunpack.c.h.b16 %v1754
    %v1761 = vpack.c.b16 %v1757, %v1757
    %v1762 = vpack.c.b16 %v1758, %v1758
    %v1763 = vpack.c.b16 %v1759, %v1759
    %v1764 = vpack.c.b16 %v1760, %v1760
    %v1766 = vpack.i.b16 %v1761, %v1761
    %v1768 = vperm.slane %v1766, 0
    %v1770 = vpack.i.b16 %v1762, %v1762
    %v1772 = vperm.slane %v1770, 0
    %v1774 = vpack.i.b16 %v1763, %v1763
    %v1776 = vperm.slane %v1774, 0
    %v1778 = vpack.i.b16 %v1764, %v1764
    %v1780 = vperm.slane %v1778, 0
    %v1781 = vunpack.c.l.bf16 %v1742
    %v1782 = vunpack.c.h.bf16 %v1742
    %v1783 = vunpack.c.l.bf16 %v1743
    %v1784 = vunpack.c.h.bf16 %v1743
    %v1785 = vunpack.c.l.bf16 %v1768
    %v1786 = vunpack.c.l.bf16 %v1772
    %v1787 = vunpack.c.l.bf16 %v1776
    %v1788 = vunpack.c.l.bf16 %v1780
    %v1789 = vadd.f32 %v1781, %v1785
    %v1790 = vadd.f32 %v1782, %v1786
    %v1791 = vadd.f32 %v1783, %v1787
    %v1792 = vadd.f32 %v1784, %v1788
    %v1793 = vpack.c.bf16 %v1790, %v1789
    %v1794 = vpack.c.bf16 %v1792, %v1791
    %v1795 = vunpack.c.l.bf16 %v1793
    %v1796 = vunpack.c.h.bf16 %v1793
    %v1797 = vunpack.c.l.bf16 %v1794
    %v1798 = vunpack.c.h.bf16 %v1794
    %v1799 = vmax.f32 %v1795, 0.0
    %v1800 = vmax.f32 %v1796, 0.0
    %v1801 = vmax.f32 %v1797, 0.0
    %v1802 = vmax.f32 %v1798, 0.0
    %v1803 = vpack.c.bf16 %v1799, %v1799
    %v1804 = vpack.c.bf16 %v1800, %v1800
    %v1805 = vpack.c.bf16 %v1801, %v1801
    %v1806 = vpack.c.bf16 %v1802, %v1802
    %v1807 = vld [vmem:[#allocation8] sm:$0xff]
    %v1808 = vld [vmem:[#allocation8 + $0x8] sm:$0xff]
    %v1809 = vld [vmem:[#allocation8 + $0x10] sm:$0xff]
    %v1810 = vld [vmem:[#allocation8 + $0x18] sm:$0xff]
    %v1811 = vld [vmem:[#allocation8 + $0x20] sm:$0xff]
    %v1812 = vld [vmem:[#allocation8 + $0x28] sm:$0xff]
    %v1813 = vld [vmem:[#allocation8 + $0x30] sm:$0xff]
    %v1814 = vld [vmem:[#allocation8 + $0x38] sm:$0xff]
    %v1815 = vld [vmem:[#allocation8 + $0x40] sm:$0xff]
    %v1816 = vld [vmem:[#allocation8 + $0x48] sm:$0xff]
    %v1817 = vld [vmem:[#allocation8 + $0x50] sm:$0xff]
    %v1818 = vld [vmem:[#allocation8 + $0x58] sm:$0xff]
    %v1819 = vld [vmem:[#allocation8 + $0x60] sm:$0xff]
    %v1820 = vld [vmem:[#allocation8 + $0x68] sm:$0xff]
    %v1821 = vld [vmem:[#allocation8 + $0x70] sm:$0xff]
    %v1822 = vld [vmem:[#allocation8 + $0x78] sm:$0xff]
    %v1823 = vld [vmem:[#allocation8 + $0x80] sm:$0xff]
    %v1824 = vld [vmem:[#allocation8 + $0x88] sm:$0xff]
    %v1825 = vld [vmem:[#allocation8 + $0x90] sm:$0xff]
    %v1826 = vld [vmem:[#allocation8 + $0x98] sm:$0xff]
    %v1827 = vld [vmem:[#allocation8 + $0xa0] sm:$0xff]
    %v1828 = vld [vmem:[#allocation8 + $0xa8] sm:$0xff]
    %v1829 = vld [vmem:[#allocation8 + $0xb0] sm:$0xff]
    %v1830 = vld [vmem:[#allocation8 + $0xb8] sm:$0xff]
    %v1831 = vld [vmem:[#allocation8 + $0xc0] sm:$0xff]
    %v1832 = vld [vmem:[#allocation8 + $0xc8] sm:$0xff]
    %v1833 = vld [vmem:[#allocation8 + $0xd0] sm:$0xff]
    %v1834 = vld [vmem:[#allocation8 + $0xd8] sm:$0xff]
    %v1835 = vld [vmem:[#allocation8 + $0xe0] sm:$0xff]
    %v1836 = vld [vmem:[#allocation8 + $0xe8] sm:$0xff]
    %v1837 = vld [vmem:[#allocation8 + $0xf0] sm:$0xff]
    %v1838 = vld [vmem:[#allocation8 + $0xf8] sm:$0xff]
    %v1839 = vld [vmem:[#allocation8 + $0x100] sm:$0xff]
    %v1840 = vld [vmem:[#allocation8 + $0x108] sm:$0xff]
    %v1841 = vld [vmem:[#allocation8 + $0x110] sm:$0xff]
    %v1842 = vld [vmem:[#allocation8 + $0x118] sm:$0xff]
    %v1843 = vld [vmem:[#allocation8 + $0x120] sm:$0xff]
    %v1844 = vld [vmem:[#allocation8 + $0x128] sm:$0xff]
    %v1845 = vld [vmem:[#allocation8 + $0x130] sm:$0xff]
    %v1846 = vld [vmem:[#allocation8 + $0x138] sm:$0xff]
    %v1847 = vld [vmem:[#allocation8 + $0x140] sm:$0xff]
    %v1848 = vld [vmem:[#allocation8 + $0x148] sm:$0xff]
    %v1849 = vld [vmem:[#allocation8 + $0x150] sm:$0xff]
    %v1850 = vld [vmem:[#allocation8 + $0x158] sm:$0xff]
    %v1851 = vld [vmem:[#allocation8 + $0x160] sm:$0xff]
    %v1852 = vld [vmem:[#allocation8 + $0x168] sm:$0xff]
    %v1853 = vld [vmem:[#allocation8 + $0x170] sm:$0xff]
    %v1854 = vld [vmem:[#allocation8 + $0x178] sm:$0xff]
    %v1855 = vld [vmem:[#allocation8 + $0x180] sm:$0xff]
    %v1856 = vld [vmem:[#allocation8 + $0x188] sm:$0xff]
    %v1857 = vld [vmem:[#allocation8 + $0x190] sm:$0xff]
    %v1858 = vld [vmem:[#allocation8 + $0x198] sm:$0xff]
    %v1859 = vld [vmem:[#allocation8 + $0x1a0] sm:$0xff]
    %v1860 = vld [vmem:[#allocation8 + $0x1a8] sm:$0xff]
    %v1861 = vld [vmem:[#allocation8 + $0x1b0] sm:$0xff]
    %v1862 = vld [vmem:[#allocation8 + $0x1b8] sm:$0xff]
    %v1863 = vld [vmem:[#allocation8 + $0x1c0] sm:$0xff]
    %v1864 = vld [vmem:[#allocation8 + $0x1c8] sm:$0xff]
    %v1865 = vld [vmem:[#allocation8 + $0x1d0] sm:$0xff]
    %v1866 = vld [vmem:[#allocation8 + $0x1d8] sm:$0xff]
    %v1867 = vld [vmem:[#allocation8 + $0x1e0] sm:$0xff]
    %v1868 = vld [vmem:[#allocation8 + $0x1e8] sm:$0xff]
    %v1869 = vld [vmem:[#allocation8 + $0x1f0] sm:$0xff]
    %v1870 = vld [vmem:[#allocation8 + $0x1f8] sm:$0xff]
    %v1871 = vld [vmem:[#allocation8 + $0x200] sm:$0xff]
    %v1872 = vld [vmem:[#allocation8 + $0x208] sm:$0xff]
    %v1873 = vld [vmem:[#allocation8 + $0x210] sm:$0xff]
    %v1874 = vld [vmem:[#allocation8 + $0x218] sm:$0xff]
    %v1875 = vld [vmem:[#allocation8 + $0x220] sm:$0xff]
    %v1876 = vld [vmem:[#allocation8 + $0x228] sm:$0xff]
    %v1877 = vld [vmem:[#allocation8 + $0x230] sm:$0xff]
    %v1878 = vld [vmem:[#allocation8 + $0x238] sm:$0xff]
    %v1879 = vld [vmem:[#allocation8 + $0x240] sm:$0xff]
    %v1880 = vld [vmem:[#allocation8 + $0x248] sm:$0xff]
    %v1881 = vld [vmem:[#allocation8 + $0x250] sm:$0xff]
    %v1882 = vld [vmem:[#allocation8 + $0x258] sm:$0xff]
    %v1883 = vld [vmem:[#allocation8 + $0x260] sm:$0xff]
    %v1884 = vld [vmem:[#allocation8 + $0x268] sm:$0xff]
    %v1885 = vld [vmem:[#allocation8 + $0x270] sm:$0xff]
    %v1886 = vld [vmem:[#allocation8 + $0x278] sm:$0xff]
    %v1887 = vld [vmem:[#allocation8 + $0x280] sm:$0xff]
    %v1888 = vld [vmem:[#allocation8 + $0x288] sm:$0xff]
    %v1889 = vld [vmem:[#allocation8 + $0x290] sm:$0xff]
    %v1890 = vld [vmem:[#allocation8 + $0x298] sm:$0xff]
    %v1891 = vld [vmem:[#allocation8 + $0x2a0] sm:$0xff]
    %v1892 = vld [vmem:[#allocation8 + $0x2a8] sm:$0xff]
    %v1893 = vld [vmem:[#allocation8 + $0x2b0] sm:$0xff]
    %v1894 = vld [vmem:[#allocation8 + $0x2b8] sm:$0xff]
    %v1895 = vld [vmem:[#allocation8 + $0x2c0] sm:$0xff]
    %v1896 = vld [vmem:[#allocation8 + $0x2c8] sm:$0xff]
    %v1897 = vld [vmem:[#allocation8 + $0x2d0] sm:$0xff]
    %v1898 = vld [vmem:[#allocation8 + $0x2d8] sm:$0xff]
    %v1899 = vld [vmem:[#allocation8 + $0x2e0] sm:$0xff]
    %v1900 = vld [vmem:[#allocation8 + $0x2e8] sm:$0xff]
    %v1901 = vld [vmem:[#allocation8 + $0x2f0] sm:$0xff]
    %v1902 = vld [vmem:[#allocation8 + $0x2f8] sm:$0xff]
    %v1903 = vld [vmem:[#allocation8 + $0x300] sm:$0xff]
    %v1904 = vld [vmem:[#allocation8 + $0x308] sm:$0xff]
    %v1905 = vld [vmem:[#allocation8 + $0x310] sm:$0xff]
    %v1906 = vld [vmem:[#allocation8 + $0x318] sm:$0xff]
    %v1907 = vld [vmem:[#allocation8 + $0x320] sm:$0xff]
    %v1908 = vld [vmem:[#allocation8 + $0x328] sm:$0xff]
    %v1909 = vld [vmem:[#allocation8 + $0x330] sm:$0xff]
    %v1910 = vld [vmem:[#allocation8 + $0x338] sm:$0xff]
    %v1911 = vld [vmem:[#allocation8 + $0x340] sm:$0xff]
    %v1912 = vld [vmem:[#allocation8 + $0x348] sm:$0xff]
    %v1913 = vld [vmem:[#allocation8 + $0x350] sm:$0xff]
    %v1914 = vld [vmem:[#allocation8 + $0x358] sm:$0xff]
    %v1915 = vld [vmem:[#allocation8 + $0x360] sm:$0xff]
    %v1916 = vld [vmem:[#allocation8 + $0x368] sm:$0xff]
    %v1917 = vld [vmem:[#allocation8 + $0x370] sm:$0xff]
    %v1918 = vld [vmem:[#allocation8 + $0x378] sm:$0xff]
    %v1919 = vld [vmem:[#allocation8 + $0x380] sm:$0xff]
    %v1920 = vld [vmem:[#allocation8 + $0x388] sm:$0xff]
    %v1921 = vld [vmem:[#allocation8 + $0x390] sm:$0xff]
    %v1922 = vld [vmem:[#allocation8 + $0x398] sm:$0xff]
    %v1923 = vld [vmem:[#allocation8 + $0x3a0] sm:$0xff]
    %v1924 = vld [vmem:[#allocation8 + $0x3a8] sm:$0xff]
    %v1925 = vld [vmem:[#allocation8 + $0x3b0] sm:$0xff]
    %v1926 = vld [vmem:[#allocation8 + $0x3b8] sm:$0xff]
    %v1927 = vld [vmem:[#allocation8 + $0x3c0] sm:$0xff]
    %v1928 = vld [vmem:[#allocation8 + $0x3c8] sm:$0xff]
    %v1929 = vld [vmem:[#allocation8 + $0x3d0] sm:$0xff]
    %v1930 = vld [vmem:[#allocation8 + $0x3d8] sm:$0xff]
    %v1931 = vld [vmem:[#allocation8 + $0x3e0] sm:$0xff]
    %v1932 = vld [vmem:[#allocation8 + $0x3e8] sm:$0xff]
    %v1933 = vld [vmem:[#allocation8 + $0x3f0] sm:$0xff]
    %v1934 = vld [vmem:[#allocation8 + $0x3f8] sm:$0xff]
    %v1935 = vld [vmem:[#allocation10] ss:$4 sm:$0xf]
    %v1937 = vperm.slane %v1935, 0
    %v1938 = vperm.slane %v1935, 1
    %v1939 = vperm.slane %v1935, 2
    %v1940 = vperm.slane %v1935, 3
    %v2073 = vunpack.c.l.b16 %v1807
    %v2074 = vunpack.c.h.b16 %v1807
    %v2075 = vunpack.c.l.b16 %v1808
    %v2076 = vunpack.c.h.b16 %v1808
    %v2077 = vunpack.c.l.b16 %v1809
    %v2078 = vunpack.c.h.b16 %v1809
    %v2079 = vunpack.c.l.b16 %v1810
    %v2080 = vunpack.c.h.b16 %v1810
    %v2081 = vunpack.c.l.b16 %v1811
    %v2082 = vunpack.c.h.b16 %v1811
    %v2083 = vunpack.c.l.b16 %v1812
    %v2084 = vunpack.c.h.b16 %v1812
    %v2085 = vunpack.c.l.b16 %v1813
    %v2086 = vunpack.c.h.b16 %v1813
    %v2087 = vunpack.c.l.b16 %v1814
    %v2088 = vunpack.c.h.b16 %v1814
    %v2089 = vunpack.c.l.b16 %v1815
    %v2090 = vunpack.c.h.b16 %v1815
    %v2091 = vunpack.c.l.b16 %v1816
    %v2092 = vunpack.c.h.b16 %v1816
    %v2093 = vunpack.c.l.b16 %v1817
    %v2094 = vunpack.c.h.b16 %v1817
    %v2095 = vunpack.c.l.b16 %v1818
    %v2096 = vunpack.c.h.b16 %v1818
    %v2097 = vunpack.c.l.b16 %v1819
    %v2098 = vunpack.c.h.b16 %v1819
    %v2099 = vunpack.c.l.b16 %v1820
    %v2100 = vunpack.c.h.b16 %v1820
    %v2101 = vunpack.c.l.b16 %v1821
    %v2102 = vunpack.c.h.b16 %v1821
    %v2103 = vunpack.c.l.b16 %v1822
    %v2104 = vunpack.c.h.b16 %v1822
    %v2105 = vunpack.c.l.b16 %v1823
    %v2106 = vunpack.c.h.b16 %v1823
    %v2107 = vunpack.c.l.b16 %v1824
    %v2108 = vunpack.c.h.b16 %v1824
    %v2109 = vunpack.c.l.b16 %v1825
    %v2110 = vunpack.c.h.b16 %v1825
    %v2111 = vunpack.c.l.b16 %v1826
    %v2112 = vunpack.c.h.b16 %v1826
    %v2113 = vunpack.c.l.b16 %v1827
    %v2114 = vunpack.c.h.b16 %v1827
    %v2115 = vunpack.c.l.b16 %v1828
    %v2116 = vunpack.c.h.b16 %v1828
    %v2117 = vunpack.c.l.b16 %v1829
    %v2118 = vunpack.c.h.b16 %v1829
    %v2119 = vunpack.c.l.b16 %v1830
    %v2120 = vunpack.c.h.b16 %v1830
    %v2121 = vunpack.c.l.b16 %v1831
    %v2122 = vunpack.c.h.b16 %v1831
    %v2123 = vunpack.c.l.b16 %v1832
    %v2124 = vunpack.c.h.b16 %v1832
    %v2125 = vunpack.c.l.b16 %v1833
    %v2126 = vunpack.c.h.b16 %v1833
    %v2127 = vunpack.c.l.b16 %v1834
    %v2128 = vunpack.c.h.b16 %v1834
    %v2129 = vunpack.c.l.b16 %v1835
    %v2130 = vunpack.c.h.b16 %v1835
    %v2131 = vunpack.c.l.b16 %v1836
    %v2132 = vunpack.c.h.b16 %v1836
    %v2133 = vunpack.c.l.b16 %v1837
    %v2134 = vunpack.c.h.b16 %v1837
    %v2135 = vunpack.c.l.b16 %v1838
    %v2136 = vunpack.c.h.b16 %v1838
    %v2137 = vunpack.c.l.b16 %v1839
    %v2138 = vunpack.c.h.b16 %v1839
    %v2139 = vunpack.c.l.b16 %v1840
    %v2140 = vunpack.c.h.b16 %v1840
    %v2141 = vunpack.c.l.b16 %v1841
    %v2142 = vunpack.c.h.b16 %v1841
    %v2143 = vunpack.c.l.b16 %v1842
    %v2144 = vunpack.c.h.b16 %v1842
    %v2145 = vunpack.c.l.b16 %v1843
    %v2146 = vunpack.c.h.b16 %v1843
    %v2147 = vunpack.c.l.b16 %v1844
    %v2148 = vunpack.c.h.b16 %v1844
    %v2149 = vunpack.c.l.b16 %v1845
    %v2150 = vunpack.c.h.b16 %v1845
    %v2151 = vunpack.c.l.b16 %v1846
    %v2152 = vunpack.c.h.b16 %v1846
    %v2153 = vunpack.c.l.b16 %v1847
    %v2154 = vunpack.c.h.b16 %v1847
    %v2155 = vunpack.c.l.b16 %v1848
    %v2156 = vunpack.c.h.b16 %v1848
    %v2157 = vunpack.c.l.b16 %v1849
    %v2158 = vunpack.c.h.b16 %v1849
    %v2159 = vunpack.c.l.b16 %v1850
    %v2160 = vunpack.c.h.b16 %v1850
    %v2161 = vunpack.c.l.b16 %v1851
    %v2162 = vunpack.c.h.b16 %v1851
    %v2163 = vunpack.c.l.b16 %v1852
    %v2164 = vunpack.c.h.b16 %v1852
    %v2165 = vunpack.c.l.b16 %v1853
    %v2166 = vunpack.c.h.b16 %v1853
    %v2167 = vunpack.c.l.b16 %v1854
    %v2168 = vunpack.c.h.b16 %v1854
    %v2169 = vunpack.c.l.b16 %v1855
    %v2170 = vunpack.c.h.b16 %v1855
    %v2171 = vunpack.c.l.b16 %v1856
    %v2172 = vunpack.c.h.b16 %v1856
    %v2173 = vunpack.c.l.b16 %v1857
    %v2174 = vunpack.c.h.b16 %v1857
    %v2175 = vunpack.c.l.b16 %v1858
    %v2176 = vunpack.c.h.b16 %v1858
    %v2177 = vunpack.c.l.b16 %v1859
    %v2178 = vunpack.c.h.b16 %v1859
    %v2179 = vunpack.c.l.b16 %v1860
    %v2180 = vunpack.c.h.b16 %v1860
    %v2181 = vunpack.c.l.b16 %v1861
    %v2182 = vunpack.c.h.b16 %v1861
    %v2183 = vunpack.c.l.b16 %v1862
    %v2184 = vunpack.c.h.b16 %v1862
    %v2185 = vunpack.c.l.b16 %v1863
    %v2186 = vunpack.c.h.b16 %v1863
    %v2187 = vunpack.c.l.b16 %v1864
    %v2188 = vunpack.c.h.b16 %v1864
    %v2189 = vunpack.c.l.b16 %v1865
    %v2190 = vunpack.c.h.b16 %v1865
    %v2191 = vunpack.c.l.b16 %v1866
    %v2192 = vunpack.c.h.b16 %v1866
    %v2193 = vunpack.c.l.b16 %v1867
    %v2194 = vunpack.c.h.b16 %v1867
    %v2195 = vunpack.c.l.b16 %v1868
    %v2196 = vunpack.c.h.b16 %v1868
    %v2197 = vunpack.c.l.b16 %v1869
    %v2198 = vunpack.c.h.b16 %v1869
    %v2199 = vunpack.c.l.b16 %v1870
    %v2200 = vunpack.c.h.b16 %v1870
    %v2201 = vunpack.c.l.b16 %v1871
    %v2202 = vunpack.c.h.b16 %v1871
    %v2203 = vunpack.c.l.b16 %v1872
    %v2204 = vunpack.c.h.b16 %v1872
    %v2205 = vunpack.c.l.b16 %v1873
    %v2206 = vunpack.c.h.b16 %v1873
    %v2207 = vunpack.c.l.b16 %v1874
    %v2208 = vunpack.c.h.b16 %v1874
    %v2209 = vunpack.c.l.b16 %v1875
    %v2210 = vunpack.c.h.b16 %v1875
    %v2211 = vunpack.c.l.b16 %v1876
    %v2212 = vunpack.c.h.b16 %v1876
    %v2213 = vunpack.c.l.b16 %v1877
    %v2214 = vunpack.c.h.b16 %v1877
    %v2215 = vunpack.c.l.b16 %v1878
    %v2216 = vunpack.c.h.b16 %v1878
    %v2217 = vunpack.c.l.b16 %v1879
    %v2218 = vunpack.c.h.b16 %v1879
    %v2219 = vunpack.c.l.b16 %v1880
    %v2220 = vunpack.c.h.b16 %v1880
    %v2221 = vunpack.c.l.b16 %v1881
    %v2222 = vunpack.c.h.b16 %v1881
    %v2223 = vunpack.c.l.b16 %v1882
    %v2224 = vunpack.c.h.b16 %v1882
    %v2225 = vunpack.c.l.b16 %v1883
    %v2226 = vunpack.c.h.b16 %v1883
    %v2227 = vunpack.c.l.b16 %v1884
    %v2228 = vunpack.c.h.b16 %v1884
    %v2229 = vunpack.c.l.b16 %v1885
    %v2230 = vunpack.c.h.b16 %v1885
    %v2231 = vunpack.c.l.b16 %v1886
    %v2232 = vunpack.c.h.b16 %v1886
    %v2233 = vunpack.c.l.b16 %v1887
    %v2234 = vunpack.c.h.b16 %v1887
    %v2235 = vunpack.c.l.b16 %v1888
    %v2236 = vunpack.c.h.b16 %v1888
    %v2237 = vunpack.c.l.b16 %v1889
    %v2238 = vunpack.c.h.b16 %v1889
    %v2239 = vunpack.c.l.b16 %v1890
    %v2240 = vunpack.c.h.b16 %v1890
    %v2241 = vunpack.c.l.b16 %v1891
    %v2242 = vunpack.c.h.b16 %v1891
    %v2243 = vunpack.c.l.b16 %v1892
    %v2244 = vunpack.c.h.b16 %v1892
    %v2245 = vunpack.c.l.b16 %v1893
    %v2246 = vunpack.c.h.b16 %v1893
    %v2247 = vunpack.c.l.b16 %v1894
    %v2248 = vunpack.c.h.b16 %v1894
    %v2249 = vunpack.c.l.b16 %v1895
    %v2250 = vunpack.c.h.b16 %v1895
    %v2251 = vunpack.c.l.b16 %v1896
    %v2252 = vunpack.c.h.b16 %v1896
    %v2253 = vunpack.c.l.b16 %v1897
    %v2254 = vunpack.c.h.b16 %v1897
    %v2255 = vunpack.c.l.b16 %v1898
    %v2256 = vunpack.c.h.b16 %v1898
    %v2257 = vunpack.c.l.b16 %v1899
    %v2258 = vunpack.c.h.b16 %v1899
    %v2259 = vunpack.c.l.b16 %v1900
    %v2260 = vunpack.c.h.b16 %v1900
    %v2261 = vunpack.c.l.b16 %v1901
    %v2262 = vunpack.c.h.b16 %v1901
    %v2263 = vunpack.c.l.b16 %v1902
    %v2264 = vunpack.c.h.b16 %v1902
    %v2265 = vunpack.c.l.b16 %v1903
    %v2266 = vunpack.c.h.b16 %v1903
    %v2267 = vunpack.c.l.b16 %v1904
    %v2268 = vunpack.c.h.b16 %v1904
    %v2269 = vunpack.c.l.b16 %v1905
    %v2270 = vunpack.c.h.b16 %v1905
    %v2271 = vunpack.c.l.b16 %v1906
    %v2272 = vunpack.c.h.b16 %v1906
    %v2273 = vunpack.c.l.b16 %v1907
    %v2274 = vunpack.c.h.b16 %v1907
    %v2275 = vunpack.c.l.b16 %v1908
    %v2276 = vunpack.c.h.b16 %v1908
    %v2277 = vunpack.c.l.b16 %v1909
    %v2278 = vunpack.c.h.b16 %v1909
    %v2279 = vunpack.c.l.b16 %v1910
    %v2280 = vunpack.c.h.b16 %v1910
    %v2281 = vunpack.c.l.b16 %v1911
    %v2282 = vunpack.c.h.b16 %v1911
    %v2283 = vunpack.c.l.b16 %v1912
    %v2284 = vunpack.c.h.b16 %v1912
    %v2285 = vunpack.c.l.b16 %v1913
    %v2286 = vunpack.c.h.b16 %v1913
    %v2287 = vunpack.c.l.b16 %v1914
    %v2288 = vunpack.c.h.b16 %v1914
    %v2289 = vunpack.c.l.b16 %v1915
    %v2290 = vunpack.c.h.b16 %v1915
    %v2291 = vunpack.c.l.b16 %v1916
    %v2292 = vunpack.c.h.b16 %v1916
    %v2293 = vunpack.c.l.b16 %v1917
    %v2294 = vunpack.c.h.b16 %v1917
    %v2295 = vunpack.c.l.b16 %v1918
    %v2296 = vunpack.c.h.b16 %v1918
    %v2297 = vunpack.c.l.b16 %v1919
    %v2298 = vunpack.c.h.b16 %v1919
    %v2299 = vunpack.c.l.b16 %v1920
    %v2300 = vunpack.c.h.b16 %v1920
    %v2301 = vunpack.c.l.b16 %v1921
    %v2302 = vunpack.c.h.b16 %v1921
    %v2303 = vunpack.c.l.b16 %v1922
    %v2304 = vunpack.c.h.b16 %v1922
    %v2305 = vunpack.c.l.b16 %v1923
    %v2306 = vunpack.c.h.b16 %v1923
    %v2307 = vunpack.c.l.b16 %v1924
    %v2308 = vunpack.c.h.b16 %v1924
    %v2309 = vunpack.c.l.b16 %v1925
    %v2310 = vunpack.c.h.b16 %v1925
    %v2311 = vunpack.c.l.b16 %v1926
    %v2312 = vunpack.c.h.b16 %v1926
    %v2313 = vunpack.c.l.b16 %v1927
    %v2314 = vunpack.c.h.b16 %v1927
    %v2315 = vunpack.c.l.b16 %v1928
    %v2316 = vunpack.c.h.b16 %v1928
    %v2317 = vunpack.c.l.b16 %v1929
    %v2318 = vunpack.c.h.b16 %v1929
    %v2319 = vunpack.c.l.b16 %v1930
    %v2320 = vunpack.c.h.b16 %v1930
    %v2321 = vunpack.c.l.b16 %v1931
    %v2322 = vunpack.c.h.b16 %v1931
    %v2323 = vunpack.c.l.b16 %v1932
    %v2324 = vunpack.c.h.b16 %v1932
    %v2325 = vunpack.c.l.b16 %v1933
    %v2326 = vunpack.c.h.b16 %v1933
    %v2327 = vunpack.c.l.b16 %v1934
    %v2328 = vunpack.c.h.b16 %v1934
    %v2329 = vpack.c.b16 %v2077, %v2073
    %v2330 = vpack.c.b16 %v2078, %v2074
    %v2331 = vpack.c.b16 %v2079, %v2075
    %v2332 = vpack.c.b16 %v2080, %v2076
    %v2333 = vpack.c.b16 %v2085, %v2081
    %v2334 = vpack.c.b16 %v2086, %v2082
    %v2335 = vpack.c.b16 %v2087, %v2083
    %v2336 = vpack.c.b16 %v2088, %v2084
    %v2337 = vpack.c.b16 %v2093, %v2089
    %v2338 = vpack.c.b16 %v2094, %v2090
    %v2339 = vpack.c.b16 %v2095, %v2091
    %v2340 = vpack.c.b16 %v2096, %v2092
    %v2341 = vpack.c.b16 %v2101, %v2097
    %v2342 = vpack.c.b16 %v2102, %v2098
    %v2343 = vpack.c.b16 %v2103, %v2099
    %v2344 = vpack.c.b16 %v2104, %v2100
    %v2345 = vpack.c.b16 %v2109, %v2105
    %v2346 = vpack.c.b16 %v2110, %v2106
    %v2347 = vpack.c.b16 %v2111, %v2107
    %v2348 = vpack.c.b16 %v2112, %v2108
    %v2349 = vpack.c.b16 %v2117, %v2113
    %v2350 = vpack.c.b16 %v2118, %v2114
    %v2351 = vpack.c.b16 %v2119, %v2115
    %v2352 = vpack.c.b16 %v2120, %v2116
    %v2353 = vpack.c.b16 %v2125, %v2121
    %v2354 = vpack.c.b16 %v2126, %v2122
    %v2355 = vpack.c.b16 %v2127, %v2123
    %v2356 = vpack.c.b16 %v2128, %v2124
    %v2357 = vpack.c.b16 %v2133, %v2129
    %v2358 = vpack.c.b16 %v2134, %v2130
    %v2359 = vpack.c.b16 %v2135, %v2131
    %v2360 = vpack.c.b16 %v2136, %v2132
    %v2361 = vpack.c.b16 %v2141, %v2137
    %v2362 = vpack.c.b16 %v2142, %v2138
    %v2363 = vpack.c.b16 %v2143, %v2139
    %v2364 = vpack.c.b16 %v2144, %v2140
    %v2365 = vpack.c.b16 %v2149, %v2145
    %v2366 = vpack.c.b16 %v2150, %v2146
    %v2367 = vpack.c.b16 %v2151, %v2147
    %v2368 = vpack.c.b16 %v2152, %v2148
    %v2369 = vpack.c.b16 %v2157, %v2153
    %v2370 = vpack.c.b16 %v2158, %v2154
    %v2371 = vpack.c.b16 %v2159, %v2155
    %v2372 = vpack.c.b16 %v2160, %v2156
    %v2373 = vpack.c.b16 %v2165, %v2161
    %v2374 = vpack.c.b16 %v2166, %v2162
    %v2375 = vpack.c.b16 %v2167, %v2163
    %v2376 = vpack.c.b16 %v2168, %v2164
    %v2377 = vpack.c.b16 %v2173, %v2169
    %v2378 = vpack.c.b16 %v2174, %v2170
    %v2379 = vpack.c.b16 %v2175, %v2171
    %v2380 = vpack.c.b16 %v2176, %v2172
    %v2381 = vpack.c.b16 %v2181, %v2177
    %v2382 = vpack.c.b16 %v2182, %v2178
    %v2383 = vpack.c.b16 %v2183, %v2179
    %v2384 = vpack.c.b16 %v2184, %v2180
    %v2385 = vpack.c.b16 %v2189, %v2185
    %v2386 = vpack.c.b16 %v2190, %v2186
    %v2387 = vpack.c.b16 %v2191, %v2187
    %v2388 = vpack.c.b16 %v2192, %v2188
    %v2389 = vpack.c.b16 %v2197, %v2193
    %v2390 = vpack.c.b16 %v2198, %v2194
    %v2391 = vpack.c.b16 %v2199, %v2195
    %v2392 = vpack.c.b16 %v2200, %v2196
    %v2393 = vpack.c.b16 %v2205, %v2201
    %v2394 = vpack.c.b16 %v2206, %v2202
    %v2395 = vpack.c.b16 %v2207, %v2203
    %v2396 = vpack.c.b16 %v2208, %v2204
    %v2397 = vpack.c.b16 %v2213, %v2209
    %v2398 = vpack.c.b16 %v2214, %v2210
    %v2399 = vpack.c.b16 %v2215, %v2211
    %v2400 = vpack.c.b16 %v2216, %v2212
    %v2401 = vpack.c.b16 %v2221, %v2217
    %v2402 = vpack.c.b16 %v2222, %v2218
    %v2403 = vpack.c.b16 %v2223, %v2219
    %v2404 = vpack.c.b16 %v2224, %v2220
    %v2405 = vpack.c.b16 %v2229, %v2225
    %v2406 = vpack.c.b16 %v2230, %v2226
    %v2407 = vpack.c.b16 %v2231, %v2227
    %v2408 = vpack.c.b16 %v2232, %v2228
    %v2409 = vpack.c.b16 %v2237, %v2233
    %v2410 = vpack.c.b16 %v2238, %v2234
    %v2411 = vpack.c.b16 %v2239, %v2235
    %v2412 = vpack.c.b16 %v2240, %v2236
    %v2413 = vpack.c.b16 %v2245, %v2241
    %v2414 = vpack.c.b16 %v2246, %v2242
    %v2415 = vpack.c.b16 %v2247, %v2243
    %v2416 = vpack.c.b16 %v2248, %v2244
    %v2417 = vpack.c.b16 %v2253, %v2249
    %v2418 = vpack.c.b16 %v2254, %v2250
    %v2419 = vpack.c.b16 %v2255, %v2251
    %v2420 = vpack.c.b16 %v2256, %v2252
    %v2421 = vpack.c.b16 %v2261, %v2257
    %v2422 = vpack.c.b16 %v2262, %v2258
    %v2423 = vpack.c.b16 %v2263, %v2259
    %v2424 = vpack.c.b16 %v2264, %v2260
    %v2425 = vpack.c.b16 %v2269, %v2265
    %v2426 = vpack.c.b16 %v2270, %v2266
    %v2427 = vpack.c.b16 %v2271, %v2267
    %v2428 = vpack.c.b16 %v2272, %v2268
    %v2429 = vpack.c.b16 %v2277, %v2273
    %v2430 = vpack.c.b16 %v2278, %v2274
    %v2431 = vpack.c.b16 %v2279, %v2275
    %v2432 = vpack.c.b16 %v2280, %v2276
    %v2433 = vpack.c.b16 %v2285, %v2281
    %v2434 = vpack.c.b16 %v2286, %v2282
    %v2435 = vpack.c.b16 %v2287, %v2283
    %v2436 = vpack.c.b16 %v2288, %v2284
    %v2437 = vpack.c.b16 %v2293, %v2289
    %v2438 = vpack.c.b16 %v2294, %v2290
    %v2439 = vpack.c.b16 %v2295, %v2291
    %v2440 = vpack.c.b16 %v2296, %v2292
    %v2441 = vpack.c.b16 %v2301, %v2297
    %v2442 = vpack.c.b16 %v2302, %v2298
    %v2443 = vpack.c.b16 %v2303, %v2299
    %v2444 = vpack.c.b16 %v2304, %v2300
    %v2445 = vpack.c.b16 %v2309, %v2305
    %v2446 = vpack.c.b16 %v2310, %v2306
    %v2447 = vpack.c.b16 %v2311, %v2307
    %v2448 = vpack.c.b16 %v2312, %v2308
    %v2449 = vpack.c.b16 %v2317, %v2313
    %v2450 = vpack.c.b16 %v2318, %v2314
    %v2451 = vpack.c.b16 %v2319, %v2315
    %v2452 = vpack.c.b16 %v2320, %v2316
    %v2453 = vpack.c.b16 %v2325, %v2321
    %v2454 = vpack.c.b16 %v2326, %v2322
    %v2455 = vpack.c.b16 %v2327, %v2323
    %v2456 = vpack.c.b16 %v2328, %v2324
    %2585 = vmatpush.bf16.msra.mxu0 %v2357
    %2586 = vmatpush.bf16.msra.mxu0 %v2353
    %2587 = vmatpush.bf16.msra.mxu0 %v2349
    %2588 = vmatpush.bf16.msra.mxu0 %v2345
    %2589 = vmatpush.bf16.msra.mxu0 %v2341
    %2590 = vmatpush.bf16.msra.mxu0 %v2337
    %2591 = vmatpush.bf16.msra.mxu0 %v2333
    %2592 = vmatpush.bf16.msra.mxu0 %v2329
    %2593 = vmatmul.bf16.gmra.mxu0 %v1803
    %v2594 = vpop.f32.mrf.mxu0
    %v2595 = vadd.f32 %v1937, %v2594
    %v2596 = vpop.f32.mrf.mxu0
    %2597 = vdwg.mxu0
    %2598 = vmatpush.bf16.msra.mxu0 %v2389
    %2599 = vmatpush.bf16.msra.mxu0 %v2385
    %2600 = vmatpush.bf16.msra.mxu0 %v2381
    %2601 = vmatpush.bf16.msra.mxu0 %v2377
    %2602 = vmatpush.bf16.msra.mxu0 %v2373
    %2603 = vmatpush.bf16.msra.mxu0 %v2369
    %2604 = vmatpush.bf16.msra.mxu0 %v2365
    %2605 = vmatpush.bf16.msra.mxu0 %v2361
    %2606 = vmatmul.bf16.gmra.mxu0 %v1804
    %v2607 = vpop.f32.mrf.mxu0
    %v2608 = vadd.f32 %v2595, %v2607
    %v2609 = vpop.f32.mrf.mxu0
    %2610 = vdwg.mxu0
    %2611 = vmatpush.bf16.msra.mxu0 %v2421
    %2612 = vmatpush.bf16.msra.mxu0 %v2417
    %2613 = vmatpush.bf16.msra.mxu0 %v2413
    %2614 = vmatpush.bf16.msra.mxu0 %v2409
    %2615 = vmatpush.bf16.msra.mxu0 %v2405
    %2616 = vmatpush.bf16.msra.mxu0 %v2401
    %2617 = vmatpush.bf16.msra.mxu0 %v2397
    %2618 = vmatpush.bf16.msra.mxu0 %v2393
    %2619 = vmatmul.bf16.gmra.mxu0 %v1805
    %v2620 = vpop.f32.mrf.mxu0
    %v2621 = vadd.f32 %v2608, %v2620
    %v2622 = vpop.f32.mrf.mxu0
    %2623 = vdwg.mxu0
    %2624 = vmatpush.bf16.msra.mxu0 %v2453
    %2625 = vmatpush.bf16.msra.mxu0 %v2449
    %2626 = vmatpush.bf16.msra.mxu0 %v2445
    %2627 = vmatpush.bf16.msra.mxu0 %v2441
    %2628 = vmatpush.bf16.msra.mxu0 %v2437
    %2629 = vmatpush.bf16.msra.mxu0 %v2433
    %2630 = vmatpush.bf16.msra.mxu0 %v2429
    %2631 = vmatpush.bf16.msra.mxu0 %v2425
    %2632 = vmatmul.bf16.gmra.mxu0 %v1806
    %v2633 = vpop.f32.mrf.mxu0
    %v2634 = vadd.f32 %v2621, %v2633
    %v2635 = vpop.f32.mrf.mxu0
    %2636 = vdwg.mxu0
    %2637 = vmatpush.bf16.msra.mxu0 %v2358
    %2638 = vmatpush.bf16.msra.mxu0 %v2354
    %2639 = vmatpush.bf16.msra.mxu0 %v2350
    %2640 = vmatpush.bf16.msra.mxu0 %v2346
    %2641 = vmatpush.bf16.msra.mxu0 %v2342
    %2642 = vmatpush.bf16.msra.mxu0 %v2338
    %2643 = vmatpush.bf16.msra.mxu0 %v2334
    %2644 = vmatpush.bf16.msra.mxu0 %v2330
    %2645 = vmatmul.bf16.gmra.mxu0 %v1803
    %v2646 = vpop.f32.mrf.mxu0
    %v2647 = vadd.f32 %v1938, %v2646
    %v2648 = vpop.f32.mrf.mxu0
    %2649 = vdwg.mxu0
    %2650 = vmatpush.bf16.msra.mxu0 %v2390
    %2651 = vmatpush.bf16.msra.mxu0 %v2386
    %2652 = vmatpush.bf16.msra.mxu0 %v2382
    %2653 = vmatpush.bf16.msra.mxu0 %v2378
    %2654 = vmatpush.bf16.msra.mxu0 %v2374
    %2655 = vmatpush.bf16.msra.mxu0 %v2370
    %2656 = vmatpush.bf16.msra.mxu0 %v2366
    %2657 = vmatpush.bf16.msra.mxu0 %v2362
    %2658 = vmatmul.bf16.gmra.mxu0 %v1804
    %v2659 = vpop.f32.mrf.mxu0
    %v2660 = vadd.f32 %v2647, %v2659
    %v2661 = vpop.f32.mrf.mxu0
    %2662 = vdwg.mxu0
    %2663 = vmatpush.bf16.msra.mxu0 %v2422
    %2664 = vmatpush.bf16.msra.mxu0 %v2418
    %2665 = vmatpush.bf16.msra.mxu0 %v2414
    %2666 = vmatpush.bf16.msra.mxu0 %v2410
    %2667 = vmatpush.bf16.msra.mxu0 %v2406
    %2668 = vmatpush.bf16.msra.mxu0 %v2402
    %2669 = vmatpush.bf16.msra.mxu0 %v2398
    %2670 = vmatpush.bf16.msra.mxu0 %v2394
    %2671 = vmatmul.bf16.gmra.mxu0 %v1805
    %v2672 = vpop.f32.mrf.mxu0
    %v2673 = vadd.f32 %v2660, %v2672
    %v2674 = vpop.f32.mrf.mxu0
    %2675 = vdwg.mxu0
    %2676 = vmatpush.bf16.msra.mxu0 %v2454
    %2677 = vmatpush.bf16.msra.mxu0 %v2450
    %2678 = vmatpush.bf16.msra.mxu0 %v2446
    %2679 = vmatpush.bf16.msra.mxu0 %v2442
    %2680 = vmatpush.bf16.msra.mxu0 %v2438
    %2681 = vmatpush.bf16.msra.mxu0 %v2434
    %2682 = vmatpush.bf16.msra.mxu0 %v2430
    %2683 = vmatpush.bf16.msra.mxu0 %v2426
    %2684 = vmatmul.bf16.gmra.mxu0 %v1806
    %v2685 = vpop.f32.mrf.mxu0
    %v2686 = vadd.f32 %v2673, %v2685
    %v2687 = vpop.f32.mrf.mxu0
    %2688 = vdwg.mxu0
    %2689 = vmatpush.bf16.msra.mxu0 %v2359
    %2690 = vmatpush.bf16.msra.mxu0 %v2355
    %2691 = vmatpush.bf16.msra.mxu0 %v2351
    %2692 = vmatpush.bf16.msra.mxu0 %v2347
    %2693 = vmatpush.bf16.msra.mxu0 %v2343
    %2694 = vmatpush.bf16.msra.mxu0 %v2339
    %2695 = vmatpush.bf16.msra.mxu0 %v2335
    %2696 = vmatpush.bf16.msra.mxu0 %v2331
    %2697 = vmatmul.bf16.gmra.mxu0 %v1803
    %v2698 = vpop.f32.mrf.mxu0
    %v2699 = vadd.f32 %v1939, %v2698
    %v2700 = vpop.f32.mrf.mxu0
    %2701 = vdwg.mxu0
    %2702 = vmatpush.bf16.msra.mxu0 %v2391
    %2703 = vmatpush.bf16.msra.mxu0 %v2387
    %2704 = vmatpush.bf16.msra.mxu0 %v2383
    %2705 = vmatpush.bf16.msra.mxu0 %v2379
    %2706 = vmatpush.bf16.msra.mxu0 %v2375
    %2707 = vmatpush.bf16.msra.mxu0 %v2371
    %2708 = vmatpush.bf16.msra.mxu0 %v2367
    %2709 = vmatpush.bf16.msra.mxu0 %v2363
    %2710 = vmatmul.bf16.gmra.mxu0 %v1804
    %v2711 = vpop.f32.mrf.mxu0
    %v2712 = vadd.f32 %v2699, %v2711
    %v2713 = vpop.f32.mrf.mxu0
    %2714 = vdwg.mxu0
    %2715 = vmatpush.bf16.msra.mxu0 %v2423
    %2716 = vmatpush.bf16.msra.mxu0 %v2419
    %2717 = vmatpush.bf16.msra.mxu0 %v2415
    %2718 = vmatpush.bf16.msra.mxu0 %v2411
    %2719 = vmatpush.bf16.msra.mxu0 %v2407
    %2720 = vmatpush.bf16.msra.mxu0 %v2403
    %2721 = vmatpush.bf16.msra.mxu0 %v2399
    %2722 = vmatpush.bf16.msra.mxu0 %v2395
    %2723 = vmatmul.bf16.gmra.mxu0 %v1805
    %v2724 = vpop.f32.mrf.mxu0
    %v2725 = vadd.f32 %v2712, %v2724
    %v2726 = vpop.f32.mrf.mxu0
    %2727 = vdwg.mxu0
    %2728 = vmatpush.bf16.msra.mxu0 %v2455
    %2729 = vmatpush.bf16.msra.mxu0 %v2451
    %2730 = vmatpush.bf16.msra.mxu0 %v2447
    %2731 = vmatpush.bf16.msra.mxu0 %v2443
    %2732 = vmatpush.bf16.msra.mxu0 %v2439
    %2733 = vmatpush.bf16.msra.mxu0 %v2435
    %2734 = vmatpush.bf16.msra.mxu0 %v2431
    %2735 = vmatpush.bf16.msra.mxu0 %v2427
    %2736 = vmatmul.bf16.gmra.mxu0 %v1806
    %v2737 = vpop.f32.mrf.mxu0
    %v2738 = vadd.f32 %v2725, %v2737
    %v2739 = vpop.f32.mrf.mxu0
    %2740 = vdwg.mxu0
    %2741 = vmatpush.bf16.msra.mxu0 %v2360
    %2742 = vmatpush.bf16.msra.mxu0 %v2356
    %2743 = vmatpush.bf16.msra.mxu0 %v2352
    %2744 = vmatpush.bf16.msra.mxu0 %v2348
    %2745 = vmatpush.bf16.msra.mxu0 %v2344
    %2746 = vmatpush.bf16.msra.mxu0 %v2340
    %2747 = vmatpush.bf16.msra.mxu0 %v2336
    %2748 = vmatpush.bf16.msra.mxu0 %v2332
    %2749 = vmatmul.bf16.gmra.mxu0 %v1803
    %v2750 = vpop.f32.mrf.mxu0
    %v2751 = vadd.f32 %v1940, %v2750
    %v2752 = vpop.f32.mrf.mxu0
    %2753 = vdwg.mxu0
    %2754 = vmatpush.bf16.msra.mxu0 %v2392
    %2755 = vmatpush.bf16.msra.mxu0 %v2388
    %2756 = vmatpush.bf16.msra.mxu0 %v2384
    %2757 = vmatpush.bf16.msra.mxu0 %v2380
    %2758 = vmatpush.bf16.msra.mxu0 %v2376
    %2759 = vmatpush.bf16.msra.mxu0 %v2372
    %2760 = vmatpush.bf16.msra.mxu0 %v2368
    %2761 = vmatpush.bf16.msra.mxu0 %v2364
    %2762 = vmatmul.bf16.gmra.mxu0 %v1804
    %v2763 = vpop.f32.mrf.mxu0
    %v2764 = vadd.f32 %v2751, %v2763
    %v2765 = vpop.f32.mrf.mxu0
    %2766 = vdwg.mxu0
    %2767 = vmatpush.bf16.msra.mxu0 %v2424
    %2768 = vmatpush.bf16.msra.mxu0 %v2420
    %2769 = vmatpush.bf16.msra.mxu0 %v2416
    %2770 = vmatpush.bf16.msra.mxu0 %v2412
    %2771 = vmatpush.bf16.msra.mxu0 %v2408
    %2772 = vmatpush.bf16.msra.mxu0 %v2404
    %2773 = vmatpush.bf16.msra.mxu0 %v2400
    %2774 = vmatpush.bf16.msra.mxu0 %v2396
    %2775 = vmatmul.bf16.gmra.mxu0 %v1805
    %v2776 = vpop.f32.mrf.mxu0
    %v2777 = vadd.f32 %v2764, %v2776
    %v2778 = vpop.f32.mrf.mxu0
    %2779 = vdwg.mxu0
    %2780 = vmatpush.bf16.msra.mxu0 %v2456
    %2781 = vmatpush.bf16.msra.mxu0 %v2452
    %2782 = vmatpush.bf16.msra.mxu0 %v2448
    %2783 = vmatpush.bf16.msra.mxu0 %v2444
    %2784 = vmatpush.bf16.msra.mxu0 %v2440
    %2785 = vmatpush.bf16.msra.mxu0 %v2436
    %2786 = vmatpush.bf16.msra.mxu0 %v2432
    %2787 = vmatpush.bf16.msra.mxu0 %v2428
    %2788 = vmatmul.bf16.gmra.mxu0 %v1806
    %v2789 = vpop.f32.mrf.mxu0
    %v2790 = vadd.f32 %v2777, %v2789
    %v2791 = vpop.f32.mrf.mxu0
    %2792 = vdwg.mxu0
    %v2793 = vadd.f32 %v2634, %v2686
    %v2794 = vadd.f32 %v2793, %v2738
    %v2795 = vadd.f32 %v2794, %v2790
    %2796 = vadd.xlane.f32.xlu0 %v2795
    %v2797 = vpop.xlane.xlu0 %2796
    %v2798 = vmul.f32 %v2634, %v2634
    %v2799 = vmul.f32 %v2686, %v2686
    %v2800 = vmul.f32 %v2738, %v2738
    %v2801 = vmul.f32 %v2790, %v2790
    %v2802 = vadd.f32 %v2798, %v2799
    %v2803 = vadd.f32 %v2802, %v2800
    %v2804 = vadd.f32 %v2803, %v2801
    %2805 = vadd.xlane.f32.xlu0 %v2804
    %v2806 = vpop.xlane.xlu0 %2805
    %v2807 = vmul.f32 %v2797, 0.001953125
    %v2808 = vmul.f32 %v2806, 0.001953125
    %v2809 = vmul.f32 %v2807, %v2807
    %v2810 = vsub.f32 %v2808, %v2809
    %v2811 = vadd.f32 %v2810, 1e-05
    %v2812 = vrsqrt.pop %v2811
    %v2813 = vmul.f32 %v2812, %v2811
    %v2814 = vmul.f32 %v2813, %v2812
    %v2815 = vmul.f32 0.5, %v2814
    %v2816 = vsub.f32 1.5, %v2815
    %v2817 = vmul.f32 %v2812, %v2816
    %vm2818 = vweird.f32 %v2811
    %vm2819 = vweird.f32 %v2812
    %vm2820 = vmor %vm2818, %vm2819
    %v2821 = vsel %vm2820, %v2812, %v2817
    %s2822 = scalar_lea.vmem [#allocation10], 1
    %v2823 = vld [vmem:[%s2822] ss:$4 sm:$0xf]
    %s2824 = scalar_lea.vmem [#allocation10], 2
    %v2825 = vld [vmem:[%s2824] ss:$4 sm:$0xf]
    %v2827 = vperm.slane %v2823, 0
    %v2828 = vperm.slane %v2823, 1
    %v2829 = vperm.slane %v2823, 2
    %v2830 = vperm.slane %v2823, 3
    %v2835 = vpack.c.bf16 %v2828, %v2827
    %v2836 = vpack.c.bf16 %v2830, %v2829
    %v2837 = vpack.c.bf16 %v2821, %v2821
    %v2840 = vunpack.c.l.b16 %v2835
    %v2841 = vunpack.c.h.b16 %v2835
    %v2842 = vunpack.c.l.b16 %v2836
    %v2843 = vunpack.c.h.b16 %v2836
    %v2844 = vpack.c.b16 %v2840, %v2840
    %v2845 = vpack.c.b16 %v2841, %v2841
    %v2846 = vpack.c.b16 %v2842, %v2842
    %v2847 = vpack.c.b16 %v2843, %v2843
    %v2849 = vpack.i.b16 %v2844, %v2844
    %v2851 = vperm.slane %v2849, 0
    %v2853 = vpack.i.b16 %v2845, %v2845
    %v2855 = vperm.slane %v2853, 0
    %v2857 = vpack.i.b16 %v2846, %v2846
    %v2859 = vperm.slane %v2857, 0
    %v2861 = vpack.i.b16 %v2847, %v2847
    %v2863 = vperm.slane %v2861, 0
    %v2864 = vunpack.c.l.bf16 %v2851
    %v2865 = vunpack.c.l.bf16 %v2855
    %v2866 = vunpack.c.l.bf16 %v2859
    %v2867 = vunpack.c.l.bf16 %v2863
    %v2868 = vunpack.c.l.bf16 %v2837
    %v2869 = vmul.f32 %v2864, %v2868
    %v2870 = vmul.f32 %v2865, %v2868
    %v2871 = vmul.f32 %v2866, %v2868
    %v2872 = vmul.f32 %v2867, %v2868
    %v2873 = vpack.c.bf16 %v2870, %v2869
    %v2874 = vpack.c.bf16 %v2872, %v2871
    %v2875 = vpack.c.bf16 %v2686, %v2634
    %v2876 = vpack.c.bf16 %v2790, %v2738
    %v2877 = vpack.c.bf16 %v2807, %v2807
    %v2878 = vunpack.c.l.bf16 %v2875
    %v2879 = vunpack.c.h.bf16 %v2875
    %v2880 = vunpack.c.l.bf16 %v2876
    %v2881 = vunpack.c.h.bf16 %v2876
    %v2882 = vunpack.c.l.bf16 %v2877
    %v2883 = vsub.f32 %v2878, %v2882
    %v2884 = vsub.f32 %v2879, %v2882
    %v2885 = vsub.f32 %v2880, %v2882
    %v2886 = vsub.f32 %v2881, %v2882
    %v2887 = vpack.c.bf16 %v2884, %v2883
    %v2888 = vpack.c.bf16 %v2886, %v2885
    %v2889 = vunpack.c.l.bf16 %v2887
    %v2890 = vunpack.c.h.bf16 %v2887
    %v2891 = vunpack.c.l.bf16 %v2888
    %v2892 = vunpack.c.h.bf16 %v2888
    %v2893 = vunpack.c.l.bf16 %v2873
    %v2894 = vunpack.c.h.bf16 %v2873
    %v2895 = vunpack.c.l.bf16 %v2874
    %v2896 = vunpack.c.h.bf16 %v2874
    %v2897 = vmul.f32 %v2889, %v2893
    %v2898 = vmul.f32 %v2890, %v2894
    %v2899 = vmul.f32 %v2891, %v2895
    %v2900 = vmul.f32 %v2892, %v2896
    %v2901 = vpack.c.bf16 %v2898, %v2897
    %v2902 = vpack.c.bf16 %v2900, %v2899
    %v2904 = vperm.slane %v2825, 0
    %v2905 = vperm.slane %v2825, 1
    %v2906 = vperm.slane %v2825, 2
    %v2907 = vperm.slane %v2825, 3
    %v2912 = vpack.c.bf16 %v2905, %v2904
    %v2913 = vpack.c.bf16 %v2907, %v2906
    %v2916 = vunpack.c.l.b16 %v2912
    %v2917 = vunpack.c.h.b16 %v2912
    %v2918 = vunpack.c.l.b16 %v2913
    %v2919 = vunpack.c.h.b16 %v2913
    %v2920 = vpack.c.b16 %v2916, %v2916
    %v2921 = vpack.c.b16 %v2917, %v2917
    %v2922 = vpack.c.b16 %v2918, %v2918
    %v2923 = vpack.c.b16 %v2919, %v2919
    %v2925 = vpack.i.b16 %v2920, %v2920
    %v2927 = vperm.slane %v2925, 0
    %v2929 = vpack.i.b16 %v2921, %v2921
    %v2931 = vperm.slane %v2929, 0
    %v2933 = vpack.i.b16 %v2922, %v2922
    %v2935 = vperm.slane %v2933, 0
    %v2937 = vpack.i.b16 %v2923, %v2923
    %v2939 = vperm.slane %v2937, 0
    %v2940 = vunpack.c.l.bf16 %v2901
    %v2941 = vunpack.c.h.bf16 %v2901
    %v2942 = vunpack.c.l.bf16 %v2902
    %v2943 = vunpack.c.h.bf16 %v2902
    %v2944 = vunpack.c.l.bf16 %v2927
    %v2945 = vunpack.c.l.bf16 %v2931
    %v2946 = vunpack.c.l.bf16 %v2935
    %v2947 = vunpack.c.l.bf16 %v2939
    %v2948 = vadd.f32 %v2940, %v2944
    %v2949 = vadd.f32 %v2941, %v2945
    %v2950 = vadd.f32 %v2942, %v2946
    %v2951 = vadd.f32 %v2943, %v2947
    %v2952 = vpack.c.bf16 %v2949, %v2948
    %v2953 = vpack.c.bf16 %v2951, %v2950
    %v2954 = vunpack.c.l.bf16 %v2952
    %v2955 = vunpack.c.h.bf16 %v2952
    %v2956 = vunpack.c.l.bf16 %v2953
    %v2957 = vunpack.c.h.bf16 %v2953
    %v2958 = vmax.f32 %v2954, 0.0
    %v2959 = vmax.f32 %v2955, 0.0
    %v2960 = vmax.f32 %v2956, 0.0
    %v2961 = vmax.f32 %v2957, 0.0
    %v2962 = vpack.c.bf16 %v2958, %v2958
    %v2963 = vpack.c.bf16 %v2959, %v2959
    %v2964 = vpack.c.bf16 %v2960, %v2960
    %v2965 = vpack.c.bf16 %v2961, %v2961
    %v2966 = vld [vmem:[#allocation11] sm:$0xf]
    %v2967 = vld [vmem:[#allocation11 + $0x4] sm:$0xf]
    %v2968 = vld [vmem:[#allocation11 + $0x8] sm:$0xf]
    %v2969 = vld [vmem:[#allocation11 + $0xc] sm:$0xf]
    %v2970 = vld [vmem:[#allocation11 + $0x10] sm:$0xf]
    %v2971 = vld [vmem:[#allocation11 + $0x14] sm:$0xf]
    %v2972 = vld [vmem:[#allocation11 + $0x18] sm:$0xf]
    %v2973 = vld [vmem:[#allocation11 + $0x1c] sm:$0xf]
    %v2974 = vld [vmem:[#allocation11 + $0x20] sm:$0xf]
    %v2975 = vld [vmem:[#allocation11 + $0x24] sm:$0xf]
    %v2976 = vld [vmem:[#allocation11 + $0x28] sm:$0xf]
    %v2977 = vld [vmem:[#allocation11 + $0x2c] sm:$0xf]
    %v2978 = vld [vmem:[#allocation11 + $0x30] sm:$0xf]
    %v2979 = vld [vmem:[#allocation11 + $0x34] sm:$0xf]
    %v2980 = vld [vmem:[#allocation11 + $0x38] sm:$0xf]
    %v2981 = vld [vmem:[#allocation11 + $0x3c] sm:$0xf]
    %v2982 = vld [vmem:[#allocation11 + $0x40] sm:$0xf]
    %v2983 = vld [vmem:[#allocation11 + $0x44] sm:$0xf]
    %v2984 = vld [vmem:[#allocation11 + $0x48] sm:$0xf]
    %v2985 = vld [vmem:[#allocation11 + $0x4c] sm:$0xf]
    %v2986 = vld [vmem:[#allocation11 + $0x50] sm:$0xf]
    %v2987 = vld [vmem:[#allocation11 + $0x54] sm:$0xf]
    %v2988 = vld [vmem:[#allocation11 + $0x58] sm:$0xf]
    %v2989 = vld [vmem:[#allocation11 + $0x5c] sm:$0xf]
    %v2990 = vld [vmem:[#allocation11 + $0x60] sm:$0xf]
    %v2991 = vld [vmem:[#allocation11 + $0x64] sm:$0xf]
    %v2992 = vld [vmem:[#allocation11 + $0x68] sm:$0xf]
    %v2993 = vld [vmem:[#allocation11 + $0x6c] sm:$0xf]
    %v2994 = vld [vmem:[#allocation11 + $0x70] sm:$0xf]
    %v2995 = vld [vmem:[#allocation11 + $0x74] sm:$0xf]
    %v2996 = vld [vmem:[#allocation11 + $0x78] sm:$0xf]
    %v2997 = vld [vmem:[#allocation11 + $0x7c] sm:$0xf]
    %v2998 = vld [vmem:[#allocation11 + $0x80] sm:$0xf]
    %v2999 = vld [vmem:[#allocation11 + $0x84] sm:$0xf]
    %v3000 = vld [vmem:[#allocation11 + $0x88] sm:$0xf]
    %v3001 = vld [vmem:[#allocation11 + $0x8c] sm:$0xf]
    %v3002 = vld [vmem:[#allocation11 + $0x90] sm:$0xf]
    %v3003 = vld [vmem:[#allocation11 + $0x94] sm:$0xf]
    %v3004 = vld [vmem:[#allocation11 + $0x98] sm:$0xf]
    %v3005 = vld [vmem:[#allocation11 + $0x9c] sm:$0xf]
    %v3006 = vld [vmem:[#allocation11 + $0xa0] sm:$0xf]
    %v3007 = vld [vmem:[#allocation11 + $0xa4] sm:$0xf]
    %v3008 = vld [vmem:[#allocation11 + $0xa8] sm:$0xf]
    %v3009 = vld [vmem:[#allocation11 + $0xac] sm:$0xf]
    %v3010 = vld [vmem:[#allocation11 + $0xb0] sm:$0xf]
    %v3011 = vld [vmem:[#allocation11 + $0xb4] sm:$0xf]
    %v3012 = vld [vmem:[#allocation11 + $0xb8] sm:$0xf]
    %v3013 = vld [vmem:[#allocation11 + $0xbc] sm:$0xf]
    %v3014 = vld [vmem:[#allocation11 + $0xc0] sm:$0xf]
    %v3015 = vld [vmem:[#allocation11 + $0xc4] sm:$0xf]
    %v3016 = vld [vmem:[#allocation11 + $0xc8] sm:$0xf]
    %v3017 = vld [vmem:[#allocation11 + $0xcc] sm:$0xf]
    %v3018 = vld [vmem:[#allocation11 + $0xd0] sm:$0xf]
    %v3019 = vld [vmem:[#allocation11 + $0xd4] sm:$0xf]
    %v3020 = vld [vmem:[#allocation11 + $0xd8] sm:$0xf]
    %v3021 = vld [vmem:[#allocation11 + $0xdc] sm:$0xf]
    %v3022 = vld [vmem:[#allocation11 + $0xe0] sm:$0xf]
    %v3023 = vld [vmem:[#allocation11 + $0xe4] sm:$0xf]
    %v3024 = vld [vmem:[#allocation11 + $0xe8] sm:$0xf]
    %v3025 = vld [vmem:[#allocation11 + $0xec] sm:$0xf]
    %v3026 = vld [vmem:[#allocation11 + $0xf0] sm:$0xf]
    %v3027 = vld [vmem:[#allocation11 + $0xf4] sm:$0xf]
    %v3028 = vld [vmem:[#allocation11 + $0xf8] sm:$0xf]
    %v3029 = vld [vmem:[#allocation11 + $0xfc] sm:$0xf]
    %v3030 = vld [vmem:[%s6] sm:$0x1]
    %v3031 = vperm.slane %v3030, 0
    %v3096 = vunpack.c.l.b16 %v2966
    %v3097 = vunpack.c.l.b16 %v2967
    %v3098 = vunpack.c.l.b16 %v2968
    %v3099 = vunpack.c.l.b16 %v2969
    %v3100 = vunpack.c.l.b16 %v2970
    %v3101 = vunpack.c.l.b16 %v2971
    %v3102 = vunpack.c.l.b16 %v2972
    %v3103 = vunpack.c.l.b16 %v2973
    %v3104 = vunpack.c.l.b16 %v2974
    %v3105 = vunpack.c.l.b16 %v2975
    %v3106 = vunpack.c.l.b16 %v2976
    %v3107 = vunpack.c.l.b16 %v2977
    %v3108 = vunpack.c.l.b16 %v2978
    %v3109 = vunpack.c.l.b16 %v2979
    %v3110 = vunpack.c.l.b16 %v2980
    %v3111 = vunpack.c.l.b16 %v2981
    %v3112 = vunpack.c.l.b16 %v2982
    %v3113 = vunpack.c.l.b16 %v2983
    %v3114 = vunpack.c.l.b16 %v2984
    %v3115 = vunpack.c.l.b16 %v2985
    %v3116 = vunpack.c.l.b16 %v2986
    %v3117 = vunpack.c.l.b16 %v2987
    %v3118 = vunpack.c.l.b16 %v2988
    %v3119 = vunpack.c.l.b16 %v2989
    %v3120 = vunpack.c.l.b16 %v2990
    %v3121 = vunpack.c.l.b16 %v2991
    %v3122 = vunpack.c.l.b16 %v2992
    %v3123 = vunpack.c.l.b16 %v2993
    %v3124 = vunpack.c.l.b16 %v2994
    %v3125 = vunpack.c.l.b16 %v2995
    %v3126 = vunpack.c.l.b16 %v2996
    %v3127 = vunpack.c.l.b16 %v2997
    %v3128 = vunpack.c.l.b16 %v2998
    %v3129 = vunpack.c.l.b16 %v2999
    %v3130 = vunpack.c.l.b16 %v3000
    %v3131 = vunpack.c.l.b16 %v3001
    %v3132 = vunpack.c.l.b16 %v3002
    %v3133 = vunpack.c.l.b16 %v3003
    %v3134 = vunpack.c.l.b16 %v3004
    %v3135 = vunpack.c.l.b16 %v3005
    %v3136 = vunpack.c.l.b16 %v3006
    %v3137 = vunpack.c.l.b16 %v3007
    %v3138 = vunpack.c.l.b16 %v3008
    %v3139 = vunpack.c.l.b16 %v3009
    %v3140 = vunpack.c.l.b16 %v3010
    %v3141 = vunpack.c.l.b16 %v3011
    %v3142 = vunpack.c.l.b16 %v3012
    %v3143 = vunpack.c.l.b16 %v3013
    %v3144 = vunpack.c.l.b16 %v3014
    %v3145 = vunpack.c.l.b16 %v3015
    %v3146 = vunpack.c.l.b16 %v3016
    %v3147 = vunpack.c.l.b16 %v3017
    %v3148 = vunpack.c.l.b16 %v3018
    %v3149 = vunpack.c.l.b16 %v3019
    %v3150 = vunpack.c.l.b16 %v3020
    %v3151 = vunpack.c.l.b16 %v3021
    %v3152 = vunpack.c.l.b16 %v3022
    %v3153 = vunpack.c.l.b16 %v3023
    %v3154 = vunpack.c.l.b16 %v3024
    %v3155 = vunpack.c.l.b16 %v3025
    %v3156 = vunpack.c.l.b16 %v3026
    %v3157 = vunpack.c.l.b16 %v3027
    %v3158 = vunpack.c.l.b16 %v3028
    %v3159 = vunpack.c.l.b16 %v3029
    %v3160 = vpack.c.b16 %v3097, %v3096
    %v3161 = vpack.c.b16 %v3099, %v3098
    %v3162 = vpack.c.b16 %v3101, %v3100
    %v3163 = vpack.c.b16 %v3103, %v3102
    %v3164 = vpack.c.b16 %v3105, %v3104
    %v3165 = vpack.c.b16 %v3107, %v3106
    %v3166 = vpack.c.b16 %v3109, %v3108
    %v3167 = vpack.c.b16 %v3111, %v3110
    %v3168 = vpack.c.b16 %v3113, %v3112
    %v3169 = vpack.c.b16 %v3115, %v3114
    %v3170 = vpack.c.b16 %v3117, %v3116
    %v3171 = vpack.c.b16 %v3119, %v3118
    %v3172 = vpack.c.b16 %v3121, %v3120
    %v3173 = vpack.c.b16 %v3123, %v3122
    %v3174 = vpack.c.b16 %v3125, %v3124
    %v3175 = vpack.c.b16 %v3127, %v3126
    %v3176 = vpack.c.b16 %v3129, %v3128
    %v3177 = vpack.c.b16 %v3131, %v3130
    %v3178 = vpack.c.b16 %v3133, %v3132
    %v3179 = vpack.c.b16 %v3135, %v3134
    %v3180 = vpack.c.b16 %v3137, %v3136
    %v3181 = vpack.c.b16 %v3139, %v3138
    %v3182 = vpack.c.b16 %v3141, %v3140
    %v3183 = vpack.c.b16 %v3143, %v3142
    %v3184 = vpack.c.b16 %v3145, %v3144
    %v3185 = vpack.c.b16 %v3147, %v3146
    %v3186 = vpack.c.b16 %v3149, %v3148
    %v3187 = vpack.c.b16 %v3151, %v3150
    %v3188 = vpack.c.b16 %v3153, %v3152
    %v3189 = vpack.c.b16 %v3155, %v3154
    %v3190 = vpack.c.b16 %v3157, %v3156
    %v3191 = vpack.c.b16 %v3159, %v3158
    %3224 = vmatpush.bf16.msra.mxu0 %v3167
    %3225 = vmatpush.bf16.msra.mxu0 %v3166
    %3226 = vmatpush.bf16.msra.mxu0 %v3165
    %3227 = vmatpush.bf16.msra.mxu0 %v3164
    %3228 = vmatpush.bf16.msra.mxu0 %v3163
    %3229 = vmatpush.bf16.msra.mxu0 %v3162
    %3230 = vmatpush.bf16.msra.mxu0 %v3161
    %3231 = vmatpush.bf16.msra.mxu0 %v3160
    %3232 = vmatmul.bf16.gmra.mxu0 %v2962
    %v3233 = vpop.f32.mrf.mxu0
    %v3234 = vadd.f32 %v3031, %v3233
    %v3235 = vpop.f32.mrf.mxu0
    %3236 = vdwg.mxu0
    %3237 = vmatpush.bf16.msra.mxu0 %v3175
    %3238 = vmatpush.bf16.msra.mxu0 %v3174
    %3239 = vmatpush.bf16.msra.mxu0 %v3173
    %3240 = vmatpush.bf16.msra.mxu0 %v3172
    %3241 = vmatpush.bf16.msra.mxu0 %v3171
    %3242 = vmatpush.bf16.msra.mxu0 %v3170
    %3243 = vmatpush.bf16.msra.mxu0 %v3169
    %3244 = vmatpush.bf16.msra.mxu0 %v3168
    %3245 = vmatmul.bf16.gmra.mxu0 %v2963
    %v3246 = vpop.f32.mrf.mxu0
    %v3247 = vadd.f32 %v3234, %v3246
    %v3248 = vpop.f32.mrf.mxu0
    %3249 = vdwg.mxu0
    %3250 = vmatpush.bf16.msra.mxu0 %v3183
    %3251 = vmatpush.bf16.msra.mxu0 %v3182
    %3252 = vmatpush.bf16.msra.mxu0 %v3181
    %3253 = vmatpush.bf16.msra.mxu0 %v3180
    %3254 = vmatpush.bf16.msra.mxu0 %v3179
    %3255 = vmatpush.bf16.msra.mxu0 %v3178
    %3256 = vmatpush.bf16.msra.mxu0 %v3177
    %3257 = vmatpush.bf16.msra.mxu0 %v3176
    %3258 = vmatmul.bf16.gmra.mxu0 %v2964
    %v3259 = vpop.f32.mrf.mxu0
    %v3260 = vadd.f32 %v3247, %v3259
    %v3261 = vpop.f32.mrf.mxu0
    %3262 = vdwg.mxu0
    %3263 = vmatpush.bf16.msra.mxu0 %v3191
    %3264 = vmatpush.bf16.msra.mxu0 %v3190
    %3265 = vmatpush.bf16.msra.mxu0 %v3189
    %3266 = vmatpush.bf16.msra.mxu0 %v3188
    %3267 = vmatpush.bf16.msra.mxu0 %v3187
    %3268 = vmatpush.bf16.msra.mxu0 %v3186
    %3269 = vmatpush.bf16.msra.mxu0 %v3185
    %3270 = vmatpush.bf16.msra.mxu0 %v3184
    %3271 = vmatmul.bf16.gmra.mxu0 %v2965
    %v3272 = vpop.f32.mrf.mxu0
    %v3273 = vadd.f32 %v3260, %v3272
    %v3274 = vpop.f32.mrf.mxu0
    %3275 = vdwg.mxu0
    %3276 = vadd.xlane.f32.xlu0 %v3273
    %v3277 = vpop.xlane.xlu0 %3276
    %v3278 = vmul.f32 %v3273, %v3273
    %3279 = vadd.xlane.f32.xlu0 %v3278
    %v3280 = vpop.xlane.xlu0 %3279
    %v3281 = vmul.f32 %v3277, 0.0078125
    %v3282 = vmul.f32 %v3280, 0.0078125
    %v3283 = vmul.f32 %v3281, %v3281
    %v3284 = vsub.f32 %v3282, %v3283
    %v3285 = vadd.f32 %v3284, 1e-05
    %v3286 = vrsqrt.pop %v3285
    %v3287 = vmul.f32 %v3286, %v3285
    %v3288 = vmul.f32 %v3287, %v3286
    %v3289 = vmul.f32 0.5, %v3288
    %v3290 = vsub.f32 1.5, %v3289
    %v3291 = vmul.f32 %v3286, %v3290
    %vm3292 = vweird.f32 %v3285
    %vm3293 = vweird.f32 %v3286
    %vm3294 = vmor %vm3292, %vm3293
    %v3295 = vsel %vm3294, %v3286, %v3291
    %v3296 = vld [vmem:[%s6 + $0x1] sm:$0x1]
    %v3297 = vld [vmem:[%s6 + $0x2] sm:$0x1]
    %v3298 = vpack.c.bf16 %v3296, %v3296
    %v3299 = vpack.c.bf16 %v3295, %v3295
    %v3301 = vpack.i.b16 %v3298, %v3298
    %v3303 = vperm.slane %v3301, 0
    %v3304 = vunpack.c.l.bf16 %v3303
    %v3305 = vunpack.c.l.bf16 %v3299
    %v3306 = vmul.f32 %v3304, %v3305
    %v3307 = vpack.c.bf16 %v3306, %v3306
    %v3308 = vpack.c.bf16 %v3273, %v3273
    %v3309 = vpack.c.bf16 %v3281, %v3281
    %v3310 = vunpack.c.l.bf16 %v3308
    %v3311 = vunpack.c.l.bf16 %v3309
    %v3312 = vsub.f32 %v3310, %v3311
    %v3313 = vpack.c.bf16 %v3312, %v3312
    %v3314 = vunpack.c.l.bf16 %v3313
    %v3315 = vunpack.c.l.bf16 %v3307
    %v3316 = vmul.f32 %v3314, %v3315
    %v3317 = vpack.c.bf16 %v3316, %v3316
    %v3318 = vpack.c.bf16 %v3297, %v3297
    %v3320 = vpack.i.b16 %v3318, %v3318
    %v3322 = vperm.slane %v3320, 0
    %v3323 = vunpack.c.l.bf16 %v3317
    %v3324 = vunpack.c.l.bf16 %v3322
    %v3325 = vadd.f32 %v3323, %v3324
    %v3326 = vpack.c.bf16 %v3325, %v3325
    %v3327 = vunpack.c.l.bf16 %v3326
    %v3328 = vmax.f32 %v3327, 0.0
    %v3329 = vpack.c.bf16 %v3328, %v3328
    %v3330 = vld [vmem:[#allocation13] sm:$0xf]
    %v3331 = vld [vmem:[#allocation13 + $0x4] sm:$0xf]
    %v3332 = vld [vmem:[#allocation13 + $0x8] sm:$0xf]
    %v3333 = vld [vmem:[#allocation13 + $0xc] sm:$0xf]
    %v3334 = vld [vmem:[#allocation13 + $0x10] sm:$0xf]
    %v3335 = vld [vmem:[#allocation13 + $0x14] sm:$0xf]
    %v3336 = vld [vmem:[#allocation13 + $0x18] sm:$0xf]
    %v3337 = vld [vmem:[#allocation13 + $0x1c] sm:$0xf]
    %v3338 = vld [vmem:[#allocation13 + $0x20] sm:$0xf]
    %v3339 = vld [vmem:[#allocation13 + $0x24] sm:$0xf]
    %v3340 = vld [vmem:[#allocation13 + $0x28] sm:$0xf]
    %v3341 = vld [vmem:[#allocation13 + $0x2c] sm:$0xf]
    %v3342 = vld [vmem:[#allocation13 + $0x30] sm:$0xf]
    %v3343 = vld [vmem:[#allocation13 + $0x34] sm:$0xf]
    %v3344 = vld [vmem:[#allocation13 + $0x38] sm:$0xf]
    %v3345 = vld [vmem:[#allocation13 + $0x3c] sm:$0xf]
    %v3346 = vld [vmem:[%s8] sm:$0x1]
    %v3348 = vperm.slane %v3346, 0
    %v3366 = vunpack.c.l.b16 %v3330
    %v3367 = vunpack.c.l.b16 %v3331
    %v3368 = vunpack.c.l.b16 %v3332
    %v3369 = vunpack.c.l.b16 %v3333
    %v3370 = vunpack.c.l.b16 %v3334
    %v3371 = vunpack.c.l.b16 %v3335
    %v3372 = vunpack.c.l.b16 %v3336
    %v3373 = vunpack.c.l.b16 %v3337
    %v3374 = vunpack.c.l.b16 %v3338
    %v3375 = vunpack.c.l.b16 %v3339
    %v3376 = vunpack.c.l.b16 %v3340
    %v3377 = vunpack.c.l.b16 %v3341
    %v3378 = vunpack.c.l.b16 %v3342
    %v3379 = vunpack.c.l.b16 %v3343
    %v3380 = vunpack.c.l.b16 %v3344
    %v3381 = vunpack.c.l.b16 %v3345
    %v3382 = vpack.c.b16 %v3367, %v3366
    %v3383 = vpack.c.b16 %v3369, %v3368
    %v3384 = vpack.c.b16 %v3371, %v3370
    %v3385 = vpack.c.b16 %v3373, %v3372
    %v3386 = vpack.c.b16 %v3375, %v3374
    %v3387 = vpack.c.b16 %v3377, %v3376
    %v3388 = vpack.c.b16 %v3379, %v3378
    %v3389 = vpack.c.b16 %v3381, %v3380
    %3398 = vmatpush.bf16.msra.mxu0 %v3389
    %3399 = vmatpush.bf16.msra.mxu0 %v3388
    %3400 = vmatpush.bf16.msra.mxu0 %v3387
    %3401 = vmatpush.bf16.msra.mxu0 %v3386
    %3402 = vmatpush.bf16.msra.mxu0 %v3385
    %3403 = vmatpush.bf16.msra.mxu0 %v3384
    %3404 = vmatpush.bf16.msra.mxu0 %v3383
    %3405 = vmatpush.bf16.msra.mxu0 %v3382
    %3406 = vmatmul.bf16.gmra.mxu0 %v3329
    %v3407 = vpop.f32.mrf.mxu0
    %v3408 = vadd.f32 %v3348, %v3407
    %v3409 = vpop.f32.mrf.mxu0
    %3410 = vdwg.mxu0
    %3411 = vst [vmem:[#allocation14] sm:$0xff] %v3408
    // Predicated region
    $region66: #{tpu_custom_call.1} parent=1 // pred_check
      _
    $region67: #{tpu_custom_call.1} parent=1 // pred_check_branch
      %3413 = sbr.rel (0) target = $region69
    $region68: #{tpu_custom_call.1} parent=1 // pred_region
      %3415 = vsyncadd [#allocation4], 0
      %s3417 = sshll.u32 [#allocation14], 4
      %s3418 = int_to_ptr.vmem [resolvable:$true] %s3417
      %s3419 = sshll.u32 %s9, 4
      %s3420 = int_to_ptr.hbm [resolvable:$true] %s3419
      %3422 = dma.vmem_to_hbm [thread:$0]  %s3418, 128, %s3420, [#allocation4]
    $region69: #{tpu_custom_call.1} parent=1 // pred_fallthru
      _
    // Predicated region
    $region70: #{tpu_custom_call.1} parent=1 // pred_check
      _
    $region71: #{tpu_custom_call.1} parent=1 // pred_check_branch
      %3424 = sbr.rel (0) target = $region73
    $region72: #{tpu_custom_call.1} parent=1 // pred_region
      %3426 = dma.done [#allocation4], 128
    $region73: #{tpu_custom_call.1} parent=1 // pred_fallthru
      _
    %3427 = vsyncpa [#allocation3], 1
    %3428 = vsyncpa [#allocation6], 1
    %3429 = vsyncpa [#allocation9], 1
    %3430 = vsyncpa [#allocation12], 1
    %3431 = vsyncpa [#allocation4], 1

</llo_original>
